<compile_context>
chip_gen: v7x
topology: tpu7x:2x2x1
jax: 0.10.0
libtpu: 0.0.40
codegen_flags: <defaults>
</compile_context>

<pallas_src>
import numpy as np
import jax
import jax.numpy as jnp
from jax import lax
from jax.experimental import pallas as pl
from jax.experimental.pallas import tpu as pltpu


# ---------------------------------------------------------------------------
# fused gather + scatter kernel (one grid step = one batch tile, all levels)
# ---------------------------------------------------------------------------
def _make_bfp_kernel(num_levels, refine_level, level_hw, hg, wg, flatten):
    L, r = num_levels, refine_level
    inv_l = 1.0 / float(L)
    f32 = jnp.float32

    def sel_mat(n_in, n_out, stride, off):
        # (n_in, n_out) 0/1 column-selection: out[:, j] = in[:, j*stride + off]
        ri = lax.broadcasted_iota(jnp.int32, (n_in, n_out), 0)
        ci = lax.broadcasted_iota(jnp.int32, (n_in, n_out), 1)
        return jnp.where(ri == ci * stride + off, 1.0, 0.0).astype(f32)

    def expand_mat(n_in, n_out):
        # (n_in, n_out) 0/1 nearest expansion: out[:, j] = in[:, j // f]
        f = n_out // n_in
        ri = lax.broadcasted_iota(jnp.int32, (n_in, n_out), 0)
        ci = lax.broadcasted_iota(jnp.int32, (n_in, n_out), 1)
        return jnp.where((ci >= ri * f) & (ci < ri * f + f), 1.0, 0.0).astype(f32)

    def kernel(*refs):
        x_refs = refs[:L]
        out_refs = refs[L:]
        bt = x_refs[r].shape[0]

        def load3(i):
            h, w = level_hw[i]
            v = x_refs[i][...].astype(f32)
            return v.reshape(bt, h, w) if flatten[i] else v

        def store3(i, v):
            h, w = level_hw[i]
            if flatten[i]:
                out_refs[i][...] = v.reshape(bt, h * w).astype(out_refs[i].dtype)
            else:
                out_refs[i][...] = v.astype(out_refs[i].dtype)

        def repeat_rows(v, f, h_out):
            # nearest up-sample along sublanes (H): broadcast + reshape, no MXU
            if f == 1:
                return v
            b_, h_, w_ = v.shape
            v = jnp.broadcast_to(v[:, :, None, :], (b_, h_, f, w_))
            return v.reshape(b_, h_out, w_)

        def expand_cols(v, w_out):
            # nearest up-sample along lanes (W): batch folded into matmul rows
            b_, h_, w_ = v.shape
            if w_out == w_:
                return v
            m = jnp.dot(v.reshape(b_ * h_, w_), expand_mat(w_, w_out),
                        preferred_element_type=f32)
            return m.reshape(b_, h_, w_out)

        def maxpool_cols(v, w_out, win):
            # adaptive max-pool along lanes (W): 0/1 selection matmuls + max
            b_, h_, w_ = v.shape
            if win == 1:
                return v
            v2 = v.reshape(b_ * h_, w_)
            pooled = None
            for dx in range(win):
                p = jnp.dot(v2, sel_mat(w_, w_out, win, dx),
                            preferred_element_type=f32)
                pooled = p if pooled is None else jnp.maximum(pooled, p)
            return pooled.reshape(b_, h_, w_out)

        # --- refine-level block loaded once; reused for acc init + residual --
        x_r = x_refs[r][...].astype(f32)                      # (bt, hg, wg)
        acc = x_r

        # ---------------- gather: bring every level to (hg, wg) -------------
        for i in range(L):
            if i == r:
                continue
            h, w = level_hw[i]
            if i < r:
                # adaptive max-pool: H via sublane-strided ref reads, W via MXU
                a, b = h // hg, w // wg
                if a == 1:
                    rows = x_refs[i][...].astype(f32)
                else:
                    rows = None
                    for dy in range(a):
                        rr = x_refs[i][:, pl.ds(dy, hg, stride=a), :].astype(f32)
                        rows = rr if rows is None else jnp.maximum(rows, rr)
                acc = acc + maxpool_cols(rows, wg, b)
            else:
                # nearest up-sample: W matmul first (fewer FLOPs), then H repeat
                xi = load3(i)
                up = expand_cols(xi, wg)
                up = repeat_rows(up, hg // h, hg)
                acc = acc + up

        bsf = acc * inv_l
        # refine_type=None, dcn=False -> bsf is used as-is.
        # TODO(synk): refine branches ('conv','non_local','transformer',
        #             'kqr_attention') and dcn deformable conv not implemented.

        # ---------------- scatter: residual-add bsf back to every level -----
        store3(r, x_r + bsf)
        for i in range(L):
            if i == r:
                continue
            h, w = level_hw[i]
            xi = load3(i)
            if i < r:
                # nearest up-sample of bsf: W matmul at M = bt*hg, then H repeat
                res = expand_cols(bsf, w)
                res = repeat_rows(res, h // hg, h)
            else:
                # adaptive max-pool of bsf: H via reshape+max, W via matmuls
                uh, uw = hg // h, wg // w
                rows = bsf
                if uh > 1:
                    rows = jnp.max(bsf.reshape(bt, h, uh, wg), axis=2)
                res = maxpool_cols(rows, w, uw)
            store3(i, xi + res)

    return kernel


# ---------------------------------------------------------------------------
# host-side helpers: padded VMEM estimate + tile/grid selection
# ---------------------------------------------------------------------------
def _round_up(v, m):
    return ((v + m - 1) // m) * m


def _per_row_bytes(level_hw, flatten, hg, wg, dtype):
    """Per-batch-row steady-state VMEM bytes using (sublane,128)-padded tiles."""
    itemsize = jnp.dtype(dtype).itemsize
    sub = max(8, 32 // max(itemsize, 1))          # 8 (f32) / 16 (bf16) / 32 (i8)
    io = 0
    for (h, w), fl in zip(level_hw, flatten):
        if fl:
            io += _round_up(h * w, 128) * itemsize
        else:
            io += _round_up(h, sub) * _round_up(w, 128) * itemsize
    io *= 4                                       # in + out, double-buffered
    big = max(_round_up(h, 8) * _round_up(w, 128) for h, w in level_hw)
    f32_tmp = (2 * _round_up(hg, 8) * _round_up(wg, 128) + 3 * big) * 4
    return io + f32_tmp


# ---------------------------------------------------------------------------
# BFP forward
# ---------------------------------------------------------------------------
def bfp_forward(inputs, refine_level=2):
    num_levels = len(inputs)
    assert 0 <= refine_level < num_levels
    n, c = inputs[0].shape[:2]
    dtype = inputs[0].dtype
    hg, wg = (int(s) for s in inputs[refine_level].shape[2:])
    b_total = n * c

    level_hw = [(int(x.shape[2]), int(x.shape[3])) for x in inputs]
    for i, (h, w) in enumerate(level_hw):
        # TODO(synk): non-divisible adaptive_max_pool2d / nearest sizes
        if i < refine_level:
            assert h % hg == 0 and w % wg == 0
        else:
            assert hg % h == 0 and wg % w == 0

    # lane-dense layout for small coarse levels
    flatten = [(i > refine_level) and (h * w <= 128)
               for i, (h, w) in enumerate(level_hw)]

    # ---- generation-aware VMEM budget --------------------------------------
    try:
        vmem_cap = int(pltpu.get_tpu_info().vmem_capacity_bytes)
    except Exception:
        vmem_cap = 64 * 1024 * 1024               # conservative (v7x-sized)
    vmem_limit = int(min(96 * 1024 * 1024, (vmem_cap * 3) // 4))
    step_budget = vmem_limit // 2                 # steady-state per grid step

    # ---- batch tile selection ----------------------------------------------
    divisors = [d for d in range(1, b_total + 1) if b_total % d == 0]
    tile_b = None
    for _ in range(2):
        per_row = _per_row_bytes(level_hw, flatten, hg, wg, dtype)
        cap = max(1, min(b_total, step_budget // max(per_row, 1)))
        if b_total >= 2:
            cap = min(cap, max(1, b_total // 2))  # grid >= 2: use both v7x TCs
        cands = [d for d in divisors if d <= cap]
        if any(flatten):
            # flattened 2-D blocks need an 8-aligned (or full) sublane extent
            good = [d for d in cands if d % 8 == 0 or d == b_total]
            if good:
                tile_b = max(good)
                break
            flatten = [False] * num_levels        # keep alignment, drop flatten
        else:
            tile_b = max(cands)
            break
    if tile_b is None:                            # safeguard (unreachable)
        flatten = [False] * num_levels
        tile_b = 1
    grid = (b_total // tile_b,)

    # ---- specs / shapes -----------------------------------------------------
    flat_inputs, in_specs, out_specs, out_shape = [], [], [], []
    for i, x in enumerate(inputs):
        h, w = level_hw[i]
        if flatten[i]:
            flat_inputs.append(x.reshape(b_total, h * w))
            in_specs.append(pl.BlockSpec((tile_b, h * w), lambda g: (g, 0)))
            out_specs.append(pl.BlockSpec((tile_b, h * w), lambda g: (g, 0)))
            out_shape.append(jax.ShapeDtypeStruct((b_total, h * w), dtype))
        else:
            flat_inputs.append(x.reshape(b_total, h, w))
            in_specs.append(pl.BlockSpec((tile_b, h, w), lambda g: (g, 0, 0)))
            out_specs.append(pl.BlockSpec((tile_b, h, w), lambda g: (g, 0, 0)))
            out_shape.append(jax.ShapeDtypeStruct((b_total, h, w), dtype))

    kernel = _make_bfp_kernel(num_levels, refine_level, level_hw, hg, wg,
                              flatten)

    outs = pl.pallas_call(
        kernel,
        out_shape=out_shape,
        grid_spec=pltpu.PrefetchScalarGridSpec(
            num_scalar_prefetch=0,
            grid=grid,
            in_specs=in_specs,
            out_specs=out_specs),
        compiler_params=pltpu.CompilerParams(
            dimension_semantics=("parallel",),
            vmem_limit_bytes=vmem_limit),
    )(*flat_inputs)

    return tuple(o.reshape(n, c, h, w)
                 for o, (h, w) in zip(outs, level_hw))


# ---------------------------------------------------------------------------
# pure-JAX reference (mirrors the PyTorch forward) for a correctness check
# ---------------------------------------------------------------------------
def bfp_reference(inputs, refine_level=2):
    num_levels = len(inputs)
    hg, wg = inputs[refine_level].shape[2:]

    def maxpool_to(x, hh, ww):
        N, C, H, W = x.shape
        return x.reshape(N, C, hh, H // hh, ww, W // ww).max(axis=(3, 5))

    def upsample_to(x, hh, ww):
        N, C, H, W = x.shape
        x = jnp.repeat(x, hh // H, axis=2)
        return jnp.repeat(x, ww // W, axis=3)

    feats = []
    for i, x in enumerate(inputs):
        feats.append(maxpool_to(x, hg, wg) if i < refine_level
                     else upsample_to(x, hg, wg))
    bsf = sum(feats) / num_levels
    outs = []
    for i, x in enumerate(inputs):
        h, w = x.shape[2:]
        res = upsample_to(bsf, h, w) if i < refine_level else maxpool_to(bsf, h, w)
        outs.append(res + x)
    return outs


if __name__ == "__main__":
    # Config A exercises: fine max-pool, refine level, coarse 3-D path, grid=2.
    # Config B exercises: lane-dense flattened coarse levels, 8-aligned tile_b,
    #                     grid=2.
    configs = [
        (2, 4, [16, 8, 4, 2], 2),
        (2, 8, [32, 16, 8, 4], 1),
    ]
    for (n, c, sizes, r) in configs:
        key = jax.random.PRNGKey(0)
        keys = jax.random.split(key, len(sizes))
        inputs = [jax.random.normal(k, (n, c, s, s), dtype=jnp.float32)
                  for k, s in zip(keys, sizes)]

        outs = jax.block_until_ready(bfp_forward(inputs, refine_level=r))

        expected = bfp_reference(inputs, refine_level=r)
        for o, e in zip(outs, expected):
            np.testing.assert_allclose(np.asarray(o), np.asarray(e),
                                       rtol=1e-5, atol=1e-5)
    print("KERNEL_OK")
</pallas_src>

<mosaic_0001>
module attributes {stable_mosaic.version = 11 : i64} {
  func.func @kernel(%arg0: i32, %arg1: memref<4x16x16xf32, #tpu.memory_space<vmem>>, %arg2: memref<4x8x8xf32, #tpu.memory_space<vmem>>, %arg3: memref<4x4x4xf32, #tpu.memory_space<vmem>>, %arg4: memref<4x2x2xf32, #tpu.memory_space<vmem>>, %arg5: memref<4x16x16xf32, #tpu.memory_space<vmem>>, %arg6: memref<4x8x8xf32, #tpu.memory_space<vmem>>, %arg7: memref<4x4x4xf32, #tpu.memory_space<vmem>>, %arg8: memref<4x2x2xf32, #tpu.memory_space<vmem>>) attributes {dimension_semantics = [#tpu.dimension_semantics<parallel>], iteration_bounds = array<i64: 2>, scalar_prefetch = 0 : i64, scratch_operands = 0 : i64, tpu.core_type = #tpu.core_type<tc>, window_params = [{transform_indices = @transform_0, window_bounds = array<i64: 4, 16, 16>}, {transform_indices = @transform_1, window_bounds = array<i64: 4, 8, 8>}, {transform_indices = @transform_2, window_bounds = array<i64: 4, 4, 4>}, {transform_indices = @transform_3, window_bounds = array<i64: 4, 2, 2>}, {transform_indices = @transform_4, window_bounds = array<i64: 4, 16, 16>}, {transform_indices = @transform_5, window_bounds = array<i64: 4, 8, 8>}, {transform_indices = @transform_6, window_bounds = array<i64: 4, 4, 4>}, {transform_indices = @transform_7, window_bounds = array<i64: 4, 2, 2>}]} {
    %c0 = arith.constant 0 : index
    %c0_0 = arith.constant 0 : index
    %c0_1 = arith.constant 0 : index
    %0 = vector.load %arg3[%c0, %c0_0, %c0_1] : memref<4x4x4xf32, #tpu.memory_space<vmem>>, vector<4x4x4xf32>
    %c0_2 = arith.constant 0 : index
    %c0_3 = arith.constant 0 : index
    %c0_4 = arith.constant 0 : index
    %1 = tpu.strided_load %arg1[%c0_2, %c0_3, %c0_4] {strides = array<i32: 1, 4, 1>} : memref<4x16x16xf32, #tpu.memory_space<vmem>>, vector<4x4x16xf32>
    %c0_5 = arith.constant 0 : index
    %c1 = arith.constant 1 : index
    %c0_6 = arith.constant 0 : index
    %2 = tpu.strided_load %arg1[%c0_5, %c1, %c0_6] {strides = array<i32: 1, 4, 1>} : memref<4x16x16xf32, #tpu.memory_space<vmem>>, vector<4x4x16xf32>
    %3 = arith.maximumf %1, %2 : vector<4x4x16xf32>
    %c0_7 = arith.constant 0 : index
    %c2 = arith.constant 2 : index
    %c0_8 = arith.constant 0 : index
    %4 = tpu.strided_load %arg1[%c0_7, %c2, %c0_8] {strides = array<i32: 1, 4, 1>} : memref<4x16x16xf32, #tpu.memory_space<vmem>>, vector<4x4x16xf32>
    %5 = arith.maximumf %3, %4 : vector<4x4x16xf32>
    %c0_9 = arith.constant 0 : index
    %c3 = arith.constant 3 : index
    %c0_10 = arith.constant 0 : index
    %6 = tpu.strided_load %arg1[%c0_9, %c3, %c0_10] {strides = array<i32: 1, 4, 1>} : memref<4x16x16xf32, #tpu.memory_space<vmem>>, vector<4x4x16xf32>
    %7 = arith.maximumf %5, %6 : vector<4x4x16xf32>
    %8 = vector.shape_cast %7 : vector<4x4x16xf32> to vector<16x16xf32>
    %9 = tpu.iota {dimensions = array<i32: 0>} : vector<16x4xi32>
    %10 = tpu.iota {dimensions = array<i32: 1>} : vector<16x4xi32>
    %c4_i32 = arith.constant 4 : i32
    %11 = vector.broadcast %c4_i32 : i32 to vector<16x4xi32>
    %12 = arith.muli %10, %11 : vector<16x4xi32>
    %c0_i32 = arith.constant 0 : i32
    %13 = vector.broadcast %c0_i32 : i32 to vector<16x4xi32>
    %14 = arith.addi %12, %13 : vector<16x4xi32>
    %15 = arith.cmpi eq, %9, %14 : vector<16x4xi32>
    %cst = arith.constant 1.000000e+00 : f32
    %cst_11 = arith.constant 0.000000e+00 : f32
    %16 = vector.broadcast %cst : f32 to vector<16x4xf32>
    %17 = vector.broadcast %cst_11 : f32 to vector<16x4xf32>
    %18 = arith.select %15, %16, %17 : vector<16x4xi1>, vector<16x4xf32>
    %cst_12 = arith.constant dense<0.000000e+00> : vector<16x4xf32>
    %19 = tpu.matmul %8, %18, %cst_12 {dimension_numbers = #tpu.dot_dimension_numbers<[1], [0], [0], [1], [0, 0, 1, 1], [], []>} : vector<16x16xf32>, vector<16x4xf32>, vector<16x4xf32> -> vector<16x4xf32>
    %20 = tpu.iota {dimensions = array<i32: 0>} : vector<16x4xi32>
    %21 = tpu.iota {dimensions = array<i32: 1>} : vector<16x4xi32>
    %c4_i32_13 = arith.constant 4 : i32
    %22 = vector.broadcast %c4_i32_13 : i32 to vector<16x4xi32>
    %23 = arith.muli %21, %22 : vector<16x4xi32>
    %c1_i32 = arith.constant 1 : i32
    %24 = vector.broadcast %c1_i32 : i32 to vector<16x4xi32>
    %25 = arith.addi %23, %24 : vector<16x4xi32>
    %26 = arith.cmpi eq, %20, %25 : vector<16x4xi32>
    %cst_14 = arith.constant 1.000000e+00 : f32
    %cst_15 = arith.constant 0.000000e+00 : f32
    %27 = vector.broadcast %cst_14 : f32 to vector<16x4xf32>
    %28 = vector.broadcast %cst_15 : f32 to vector<16x4xf32>
    %29 = arith.select %26, %27, %28 : vector<16x4xi1>, vector<16x4xf32>
    %cst_16 = arith.constant dense<0.000000e+00> : vector<16x4xf32>
    %30 = tpu.matmul %8, %29, %cst_16 {dimension_numbers = #tpu.dot_dimension_numbers<[1], [0], [0], [1], [0, 0, 1, 1], [], []>} : vector<16x16xf32>, vector<16x4xf32>, vector<16x4xf32> -> vector<16x4xf32>
    %31 = arith.maximumf %19, %30 : vector<16x4xf32>
    %32 = tpu.iota {dimensions = array<i32: 0>} : vector<16x4xi32>
    %33 = tpu.iota {dimensions = array<i32: 1>} : vector<16x4xi32>
    %c4_i32_17 = arith.constant 4 : i32
    %34 = vector.broadcast %c4_i32_17 : i32 to vector<16x4xi32>
    %35 = arith.muli %33, %34 : vector<16x4xi32>
    %c2_i32 = arith.constant 2 : i32
    %36 = vector.broadcast %c2_i32 : i32 to vector<16x4xi32>
    %37 = arith.addi %35, %36 : vector<16x4xi32>
    %38 = arith.cmpi eq, %32, %37 : vector<16x4xi32>
    %cst_18 = arith.constant 1.000000e+00 : f32
    %cst_19 = arith.constant 0.000000e+00 : f32
    %39 = vector.broadcast %cst_18 : f32 to vector<16x4xf32>
    %40 = vector.broadcast %cst_19 : f32 to vector<16x4xf32>
    %41 = arith.select %38, %39, %40 : vector<16x4xi1>, vector<16x4xf32>
    %cst_20 = arith.constant dense<0.000000e+00> : vector<16x4xf32>
    %42 = tpu.matmul %8, %41, %cst_20 {dimension_numbers = #tpu.dot_dimension_numbers<[1], [0], [0], [1], [0, 0, 1, 1], [], []>} : vector<16x16xf32>, vector<16x4xf32>, vector<16x4xf32> -> vector<16x4xf32>
    %43 = arith.maximumf %31, %42 : vector<16x4xf32>
    %44 = tpu.iota {dimensions = array<i32: 0>} : vector<16x4xi32>
    %45 = tpu.iota {dimensions = array<i32: 1>} : vector<16x4xi32>
    %c4_i32_21 = arith.constant 4 : i32
    %46 = vector.broadcast %c4_i32_21 : i32 to vector<16x4xi32>
    %47 = arith.muli %45, %46 : vector<16x4xi32>
    %c3_i32 = arith.constant 3 : i32
    %48 = vector.broadcast %c3_i32 : i32 to vector<16x4xi32>
    %49 = arith.addi %47, %48 : vector<16x4xi32>
    %50 = arith.cmpi eq, %44, %49 : vector<16x4xi32>
    %cst_22 = arith.constant 1.000000e+00 : f32
    %cst_23 = arith.constant 0.000000e+00 : f32
    %51 = vector.broadcast %cst_22 : f32 to vector<16x4xf32>
    %52 = vector.broadcast %cst_23 : f32 to vector<16x4xf32>
    %53 = arith.select %50, %51, %52 : vector<16x4xi1>, vector<16x4xf32>
    %cst_24 = arith.constant dense<0.000000e+00> : vector<16x4xf32>
    %54 = tpu.matmul %8, %53, %cst_24 {dimension_numbers = #tpu.dot_dimension_numbers<[1], [0], [0], [1], [0, 0, 1, 1], [], []>} : vector<16x16xf32>, vector<16x4xf32>, vector<16x4xf32> -> vector<16x4xf32>
    %55 = arith.maximumf %43, %54 : vector<16x4xf32>
    %56 = vector.shape_cast %55 : vector<16x4xf32> to vector<4x4x4xf32>
    %57 = arith.addf %0, %56 : vector<4x4x4xf32>
    %c0_25 = arith.constant 0 : index
    %c0_26 = arith.constant 0 : index
    %c0_27 = arith.constant 0 : index
    %58 = tpu.strided_load %arg2[%c0_25, %c0_26, %c0_27] {strides = array<i32: 1, 2, 1>} : memref<4x8x8xf32, #tpu.memory_space<vmem>>, vector<4x4x8xf32>
    %c0_28 = arith.constant 0 : index
    %c1_29 = arith.constant 1 : index
    %c0_30 = arith.constant 0 : index
    %59 = tpu.strided_load %arg2[%c0_28, %c1_29, %c0_30] {strides = array<i32: 1, 2, 1>} : memref<4x8x8xf32, #tpu.memory_space<vmem>>, vector<4x4x8xf32>
    %60 = arith.maximumf %58, %59 : vector<4x4x8xf32>
    %61 = vector.shape_cast %60 : vector<4x4x8xf32> to vector<16x8xf32>
    %62 = tpu.iota {dimensions = array<i32: 0>} : vector<8x4xi32>
    %63 = tpu.iota {dimensions = array<i32: 1>} : vector<8x4xi32>
    %c2_i32_31 = arith.constant 2 : i32
    %64 = vector.broadcast %c2_i32_31 : i32 to vector<8x4xi32>
    %65 = arith.muli %63, %64 : vector<8x4xi32>
    %c0_i32_32 = arith.constant 0 : i32
    %66 = vector.broadcast %c0_i32_32 : i32 to vector<8x4xi32>
    %67 = arith.addi %65, %66 : vector<8x4xi32>
    %68 = arith.cmpi eq, %62, %67 : vector<8x4xi32>
    %cst_33 = arith.constant 1.000000e+00 : f32
    %cst_34 = arith.constant 0.000000e+00 : f32
    %69 = vector.broadcast %cst_33 : f32 to vector<8x4xf32>
    %70 = vector.broadcast %cst_34 : f32 to vector<8x4xf32>
    %71 = arith.select %68, %69, %70 : vector<8x4xi1>, vector<8x4xf32>
    %cst_35 = arith.constant dense<0.000000e+00> : vector<16x4xf32>
    %72 = tpu.matmul %61, %71, %cst_35 {dimension_numbers = #tpu.dot_dimension_numbers<[1], [0], [0], [1], [0, 0, 1, 1], [], []>} : vector<16x8xf32>, vector<8x4xf32>, vector<16x4xf32> -> vector<16x4xf32>
    %73 = tpu.iota {dimensions = array<i32: 0>} : vector<8x4xi32>
    %74 = tpu.iota {dimensions = array<i32: 1>} : vector<8x4xi32>
    %c2_i32_36 = arith.constant 2 : i32
    %75 = vector.broadcast %c2_i32_36 : i32 to vector<8x4xi32>
    %76 = arith.muli %74, %75 : vector<8x4xi32>
    %c1_i32_37 = arith.constant 1 : i32
    %77 = vector.broadcast %c1_i32_37 : i32 to vector<8x4xi32>
    %78 = arith.addi %76, %77 : vector<8x4xi32>
    %79 = arith.cmpi eq, %73, %78 : vector<8x4xi32>
    %cst_38 = arith.constant 1.000000e+00 : f32
    %cst_39 = arith.constant 0.000000e+00 : f32
    %80 = vector.broadcast %cst_38 : f32 to vector<8x4xf32>
    %81 = vector.broadcast %cst_39 : f32 to vector<8x4xf32>
    %82 = arith.select %79, %80, %81 : vector<8x4xi1>, vector<8x4xf32>
    %cst_40 = arith.constant dense<0.000000e+00> : vector<16x4xf32>
    %83 = tpu.matmul %61, %82, %cst_40 {dimension_numbers = #tpu.dot_dimension_numbers<[1], [0], [0], [1], [0, 0, 1, 1], [], []>} : vector<16x8xf32>, vector<8x4xf32>, vector<16x4xf32> -> vector<16x4xf32>
    %84 = arith.maximumf %72, %83 : vector<16x4xf32>
    %85 = vector.shape_cast %84 : vector<16x4xf32> to vector<4x4x4xf32>
    %86 = arith.addf %57, %85 : vector<4x4x4xf32>
    %c0_41 = arith.constant 0 : index
    %c0_42 = arith.constant 0 : index
    %c0_43 = arith.constant 0 : index
    %87 = vector.load %arg4[%c0_41, %c0_42, %c0_43] : memref<4x2x2xf32, #tpu.memory_space<vmem>>, vector<4x2x2xf32>
    %88 = vector.shape_cast %87 : vector<4x2x2xf32> to vector<8x2xf32>
    %89 = tpu.iota {dimensions = array<i32: 0>} : vector<2x4xi32>
    %90 = tpu.iota {dimensions = array<i32: 1>} : vector<2x4xi32>
    %c2_i32_44 = arith.constant 2 : i32
    %91 = vector.broadcast %c2_i32_44 : i32 to vector<2x4xi32>
    %92 = arith.muli %89, %91 : vector<2x4xi32>
    %93 = arith.cmpi sge, %90, %92 : vector<2x4xi32>
    %c2_i32_45 = arith.constant 2 : i32
    %94 = vector.broadcast %c2_i32_45 : i32 to vector<2x4xi32>
    %95 = arith.muli %89, %94 : vector<2x4xi32>
    %c2_i32_46 = arith.constant 2 : i32
    %96 = vector.broadcast %c2_i32_46 : i32 to vector<2x4xi32>
    %97 = arith.addi %95, %96 : vector<2x4xi32>
    %98 = arith.cmpi slt, %90, %97 : vector<2x4xi32>
    %99 = arith.andi %93, %98 : vector<2x4xi1>
    %cst_47 = arith.constant 1.000000e+00 : f32
    %cst_48 = arith.constant 0.000000e+00 : f32
    %100 = vector.broadcast %cst_47 : f32 to vector<2x4xf32>
    %101 = vector.broadcast %cst_48 : f32 to vector<2x4xf32>
    %102 = arith.select %99, %100, %101 : vector<2x4xi1>, vector<2x4xf32>
    %cst_49 = arith.constant dense<0.000000e+00> : vector<8x4xf32>
    %103 = tpu.matmul %88, %102, %cst_49 {dimension_numbers = #tpu.dot_dimension_numbers<[1], [0], [0], [1], [0, 0, 1, 1], [], []>} : vector<8x2xf32>, vector<2x4xf32>, vector<8x4xf32> -> vector<8x4xf32>
    %104 = vector.shape_cast %103 : vector<8x4xf32> to vector<4x2x4xf32>
    %105 = vector.shape_cast %104 : vector<4x2x4xf32> to vector<4x2x1x4xf32>
    %106 = vector.shape_cast %105 : vector<4x2x1x4xf32> to vector<4x2x1x4xf32>
    %107 = vector.broadcast %106 : vector<4x2x1x4xf32> to vector<4x2x2x4xf32>
    %108 = vector.shape_cast %107 : vector<4x2x2x4xf32> to vector<4x4x4xf32>
    %109 = arith.addf %86, %108 : vector<4x4x4xf32>
    %cst_50 = arith.constant 2.500000e-01 : f32
    %110 = vector.broadcast %cst_50 : f32 to vector<4x4x4xf32>
    %111 = arith.mulf %109, %110 : vector<4x4x4xf32>
    %112 = arith.addf %0, %111 : vector<4x4x4xf32>
    %c0_51 = arith.constant 0 : index
    %c0_52 = arith.constant 0 : index
    %c0_53 = arith.constant 0 : index
    %113 = vector.load %arg7[%c0_51, %c0_52, %c0_53] : memref<4x4x4xf32, #tpu.memory_space<vmem>>, vector<4x4x4xf32>
    tpu.vector_store %arg7[%c0_51, %c0_52, %c0_53], %112 {strides = array<i32>} : memref<4x4x4xf32, #tpu.memory_space<vmem>>, vector<4x4x4xf32>,
    %c0_54 = arith.constant 0 : index
    %c0_55 = arith.constant 0 : index
    %c0_56 = arith.constant 0 : index
    %114 = vector.load %arg1[%c0_54, %c0_55, %c0_56] : memref<4x16x16xf32, #tpu.memory_space<vmem>>, vector<4x16x16xf32>
    %115 = vector.shape_cast %111 : vector<4x4x4xf32> to vector<16x4xf32>
    %116 = tpu.iota {dimensions = array<i32: 0>} : vector<4x16xi32>
    %117 = tpu.iota {dimensions = array<i32: 1>} : vector<4x16xi32>
    %c4_i32_57 = arith.constant 4 : i32
    %118 = vector.broadcast %c4_i32_57 : i32 to vector<4x16xi32>
    %119 = arith.muli %116, %118 : vector<4x16xi32>
    %120 = arith.cmpi sge, %117, %119 : vector<4x16xi32>
    %c4_i32_58 = arith.constant 4 : i32
    %121 = vector.broadcast %c4_i32_58 : i32 to vector<4x16xi32>
    %122 = arith.muli %116, %121 : vector<4x16xi32>
    %c4_i32_59 = arith.constant 4 : i32
    %123 = vector.broadcast %c4_i32_59 : i32 to vector<4x16xi32>
    %124 = arith.addi %122, %123 : vector<4x16xi32>
    %125 = arith.cmpi slt, %117, %124 : vector<4x16xi32>
    %126 = arith.andi %120, %125 : vector<4x16xi1>
    %cst_60 = arith.constant 1.000000e+00 : f32
    %cst_61 = arith.constant 0.000000e+00 : f32
    %127 = vector.broadcast %cst_60 : f32 to vector<4x16xf32>
    %128 = vector.broadcast %cst_61 : f32 to vector<4x16xf32>
    %129 = arith.select %126, %127, %128 : vector<4x16xi1>, vector<4x16xf32>
    %cst_62 = arith.constant dense<0.000000e+00> : vector<16x16xf32>
    %130 = tpu.matmul %115, %129, %cst_62 {dimension_numbers = #tpu.dot_dimension_numbers<[1], [0], [0], [1], [0, 0, 1, 1], [], []>} : vector<16x4xf32>, vector<4x16xf32>, vector<16x16xf32> -> vector<16x16xf32>
    %131 = vector.shape_cast %130 : vector<16x16xf32> to vector<4x4x16xf32>
    %132 = vector.shape_cast %131 : vector<4x4x16xf32> to vector<4x4x1x16xf32>
    %133 = vector.shape_cast %132 : vector<4x4x1x16xf32> to vector<4x4x1x16xf32>
    %134 = vector.broadcast %133 : vector<4x4x1x16xf32> to vector<4x4x4x16xf32>
    %135 = vector.shape_cast %134 : vector<4x4x4x16xf32> to vector<4x16x16xf32>
    %136 = arith.addf %114, %135 : vector<4x16x16xf32>
    %c0_63 = arith.constant 0 : index
    %c0_64 = arith.constant 0 : index
    %c0_65 = arith.constant 0 : index
    %137 = vector.load %arg5[%c0_63, %c0_64, %c0_65] : memref<4x16x16xf32, #tpu.memory_space<vmem>>, vector<4x16x16xf32>
    tpu.vector_store %arg5[%c0_63, %c0_64, %c0_65], %136 {strides = array<i32>} : memref<4x16x16xf32, #tpu.memory_space<vmem>>, vector<4x16x16xf32>,
    %c0_66 = arith.constant 0 : index
    %c0_67 = arith.constant 0 : index
    %c0_68 = arith.constant 0 : index
    %138 = vector.load %arg2[%c0_66, %c0_67, %c0_68] : memref<4x8x8xf32, #tpu.memory_space<vmem>>, vector<4x8x8xf32>
    %139 = vector.shape_cast %111 : vector<4x4x4xf32> to vector<16x4xf32>
    %140 = tpu.iota {dimensions = array<i32: 0>} : vector<4x8xi32>
    %141 = tpu.iota {dimensions = array<i32: 1>} : vector<4x8xi32>
    %c2_i32_69 = arith.constant 2 : i32
    %142 = vector.broadcast %c2_i32_69 : i32 to vector<4x8xi32>
    %143 = arith.muli %140, %142 : vector<4x8xi32>
    %144 = arith.cmpi sge, %141, %143 : vector<4x8xi32>
    %c2_i32_70 = arith.constant 2 : i32
    %145 = vector.broadcast %c2_i32_70 : i32 to vector<4x8xi32>
    %146 = arith.muli %140, %145 : vector<4x8xi32>
    %c2_i32_71 = arith.constant 2 : i32
    %147 = vector.broadcast %c2_i32_71 : i32 to vector<4x8xi32>
    %148 = arith.addi %146, %147 : vector<4x8xi32>
    %149 = arith.cmpi slt, %141, %148 : vector<4x8xi32>
    %150 = arith.andi %144, %149 : vector<4x8xi1>
    %cst_72 = arith.constant 1.000000e+00 : f32
    %cst_73 = arith.constant 0.000000e+00 : f32
    %151 = vector.broadcast %cst_72 : f32 to vector<4x8xf32>
    %152 = vector.broadcast %cst_73 : f32 to vector<4x8xf32>
    %153 = arith.select %150, %151, %152 : vector<4x8xi1>, vector<4x8xf32>
    %cst_74 = arith.constant dense<0.000000e+00> : vector<16x8xf32>
    %154 = tpu.matmul %139, %153, %cst_74 {dimension_numbers = #tpu.dot_dimension_numbers<[1], [0], [0], [1], [0, 0, 1, 1], [], []>} : vector<16x4xf32>, vector<4x8xf32>, vector<16x8xf32> -> vector<16x8xf32>
    %155 = vector.shape_cast %154 : vector<16x8xf32> to vector<4x4x8xf32>
    %156 = vector.shape_cast %155 : vector<4x4x8xf32> to vector<4x4x1x8xf32>
    %157 = vector.shape_cast %156 : vector<4x4x1x8xf32> to vector<4x4x1x8xf32>
    %158 = vector.broadcast %157 : vector<4x4x1x8xf32> to vector<4x4x2x8xf32>
    %159 = vector.shape_cast %158 : vector<4x4x2x8xf32> to vector<4x8x8xf32>
    %160 = arith.addf %138, %159 : vector<4x8x8xf32>
    %c0_75 = arith.constant 0 : index
    %c0_76 = arith.constant 0 : index
    %c0_77 = arith.constant 0 : index
    %161 = vector.load %arg6[%c0_75, %c0_76, %c0_77] : memref<4x8x8xf32, #tpu.memory_space<vmem>>, vector<4x8x8xf32>
    tpu.vector_store %arg6[%c0_75, %c0_76, %c0_77], %160 {strides = array<i32>} : memref<4x8x8xf32, #tpu.memory_space<vmem>>, vector<4x8x8xf32>,
    %c0_78 = arith.constant 0 : index
    %c0_79 = arith.constant 0 : index
    %c0_80 = arith.constant 0 : index
    %162 = vector.load %arg4[%c0_78, %c0_79, %c0_80] : memref<4x2x2xf32, #tpu.memory_space<vmem>>, vector<4x2x2xf32>
    %163 = vector.shape_cast %111 : vector<4x4x4xf32> to vector<4x2x2x4xf32>
    %cst_81 = arith.constant dense<0xFF800000> : vector<4x2x4xf32>
    %164 = vector.multi_reduction <maximumf>, %163, %cst_81 [2] : vector<4x2x2x4xf32> to vector<4x2x4xf32>
    %165 = vector.shape_cast %164 : vector<4x2x4xf32> to vector<8x4xf32>
    %166 = tpu.iota {dimensions = array<i32: 0>} : vector<4x2xi32>
    %167 = tpu.iota {dimensions = array<i32: 1>} : vector<4x2xi32>
    %c2_i32_82 = arith.constant 2 : i32
    %168 = vector.broadcast %c2_i32_82 : i32 to vector<4x2xi32>
    %169 = arith.muli %167, %168 : vector<4x2xi32>
    %c0_i32_83 = arith.constant 0 : i32
    %170 = vector.broadcast %c0_i32_83 : i32 to vector<4x2xi32>
    %171 = arith.addi %169, %170 : vector<4x2xi32>
    %172 = arith.cmpi eq, %166, %171 : vector<4x2xi32>
    %cst_84 = arith.constant 1.000000e+00 : f32
    %cst_85 = arith.constant 0.000000e+00 : f32
    %173 = vector.broadcast %cst_84 : f32 to vector<4x2xf32>
    %174 = vector.broadcast %cst_85 : f32 to vector<4x2xf32>
    %175 = arith.select %172, %173, %174 : vector<4x2xi1>, vector<4x2xf32>
    %cst_86 = arith.constant dense<0.000000e+00> : vector<8x2xf32>
    %176 = tpu.matmul %165, %175, %cst_86 {dimension_numbers = #tpu.dot_dimension_numbers<[1], [0], [0], [1], [0, 0, 1, 1], [], []>} : vector<8x4xf32>, vector<4x2xf32>, vector<8x2xf32> -> vector<8x2xf32>
    %177 = tpu.iota {dimensions = array<i32: 0>} : vector<4x2xi32>
    %178 = tpu.iota {dimensions = array<i32: 1>} : vector<4x2xi32>
    %c2_i32_87 = arith.constant 2 : i32
    %179 = vector.broadcast %c2_i32_87 : i32 to vector<4x2xi32>
    %180 = arith.muli %178, %179 : vector<4x2xi32>
    %c1_i32_88 = arith.constant 1 : i32
    %181 = vector.broadcast %c1_i32_88 : i32 to vector<4x2xi32>
    %182 = arith.addi %180, %181 : vector<4x2xi32>
    %183 = arith.cmpi eq, %177, %182 : vector<4x2xi32>
    %cst_89 = arith.constant 1.000000e+00 : f32
    %cst_90 = arith.constant 0.000000e+00 : f32
    %184 = vector.broadcast %cst_89 : f32 to vector<4x2xf32>
    %185 = vector.broadcast %cst_90 : f32 to vector<4x2xf32>
    %186 = arith.select %183, %184, %185 : vector<4x2xi1>, vector<4x2xf32>
    %cst_91 = arith.constant dense<0.000000e+00> : vector<8x2xf32>
    %187 = tpu.matmul %165, %186, %cst_91 {dimension_numbers = #tpu.dot_dimension_numbers<[1], [0], [0], [1], [0, 0, 1, 1], [], []>} : vector<8x4xf32>, vector<4x2xf32>, vector<8x2xf32> -> vector<8x2xf32>
    %188 = arith.maximumf %176, %187 : vector<8x2xf32>
    %189 = vector.shape_cast %188 : vector<8x2xf32> to vector<4x2x2xf32>
    %190 = arith.addf %162, %189 : vector<4x2x2xf32>
    %c0_92 = arith.constant 0 : index
    %c0_93 = arith.constant 0 : index
    %c0_94 = arith.constant 0 : index
    %191 = vector.load %arg8[%c0_92, %c0_93, %c0_94] : memref<4x2x2xf32, #tpu.memory_space<vmem>>, vector<4x2x2xf32>
    tpu.vector_store %arg8[%c0_92, %c0_93, %c0_94], %190 {strides = array<i32>} : memref<4x2x2xf32, #tpu.memory_space<vmem>>, vector<4x2x2xf32>,
    return
  }
  func.func @transform_0(%arg0: i32) -> (i32, i32, i32) {
    %c0_i32 = arith.constant 0 : i32
    %c0_i32_0 = arith.constant 0 : i32
    %c0_i32_1 = arith.constant 0 : i32
    return %arg0, %c0_i32, %c0_i32_0 : i32, i32, i32
  }
  func.func @transform_1(%arg0: i32) -> (i32, i32, i32) {
    %c0_i32 = arith.constant 0 : i32
    %c0_i32_0 = arith.constant 0 : i32
    %c0_i32_1 = arith.constant 0 : i32
    return %arg0, %c0_i32, %c0_i32_0 : i32, i32, i32
  }
  func.func @transform_2(%arg0: i32) -> (i32, i32, i32) {
    %c0_i32 = arith.constant 0 : i32
    %c0_i32_0 = arith.constant 0 : i32
    %c0_i32_1 = arith.constant 0 : i32
    return %arg0, %c0_i32, %c0_i32_0 : i32, i32, i32
  }
  func.func @transform_3(%arg0: i32) -> (i32, i32, i32) {
    %c0_i32 = arith.constant 0 : i32
    %c0_i32_0 = arith.constant 0 : i32
    %c0_i32_1 = arith.constant 0 : i32
    return %arg0, %c0_i32, %c0_i32_0 : i32, i32, i32
  }
  func.func @transform_4(%arg0: i32) -> (i32, i32, i32) {
    %c0_i32 = arith.constant 0 : i32
    %c0_i32_0 = arith.constant 0 : i32
    %c0_i32_1 = arith.constant 0 : i32
    return %arg0, %c0_i32, %c0_i32_0 : i32, i32, i32
  }
  func.func @transform_5(%arg0: i32) -> (i32, i32, i32) {
    %c0_i32 = arith.constant 0 : i32
    %c0_i32_0 = arith.constant 0 : i32
    %c0_i32_1 = arith.constant 0 : i32
    return %arg0, %c0_i32, %c0_i32_0 : i32, i32, i32
  }
  func.func @transform_6(%arg0: i32) -> (i32, i32, i32) {
    %c0_i32 = arith.constant 0 : i32
    %c0_i32_0 = arith.constant 0 : i32
    %c0_i32_1 = arith.constant 0 : i32
    return %arg0, %c0_i32, %c0_i32_0 : i32, i32, i32
  }
  func.func @transform_7(%arg0: i32) -> (i32, i32, i32) {
    %c0_i32 = arith.constant 0 : i32
    %c0_i32_0 = arith.constant 0 : i32
    %c0_i32_1 = arith.constant 0 : i32
    return %arg0, %c0_i32, %c0_i32_0 : i32, i32, i32
  }
}

</mosaic_0001>

<llo_original>
// kernel: tpu_custom_call.1
$region0: #{tpu_custom_call.1}
  #allocation0 [shape = 'u32[]', space=smem, size = 0x4, offset = 0x4, fixed_abs, tag = 'smem constant byte address 0x4 - core index']
  #allocation1 [shape = 'u32[144,128]{1,0:T(1,128)}', space=vmem, size = 0x12000, scoped, tag = 'internal scratch']
  %s0 = inlined_call_operand.hbm [shape: f32[8,16,16], index: 0, kind: input, shape index: {}]
  %s1 = inlined_call_operand.vmem [shape: f32[8,8,8], index: 1, kind: input, shape index: {}]
  %s2 = inlined_call_operand.vmem [shape: f32[8,4,4], index: 2, kind: input, shape index: {}]
  %s3 = inlined_call_operand.vmem [shape: f32[8,2,2], index: 3, kind: input, shape index: {}]
  %s4 = inlined_call_operand.hbm [shape: f32[8,16,16], index: 4, kind: output, shape index: {0}]
  %s5 = inlined_call_operand.hbm [shape: f32[8,8,8], index: 5, kind: output, shape index: {1}]
  %s6 = inlined_call_operand.vmem [shape: f32[8,4,4], index: 6, kind: output, shape index: {2}]
  %s7 = inlined_call_operand.vmem [shape: f32[8,2,2], index: 7, kind: output, shape index: {3}]
  %8 = xla_tuple %s4, %s5, %s6, %s7
  %s9 = sld [smem:[#allocation0]]
  $region77: #{tpu_custom_call.1} parent=0
    _
  %s11 = ssub.s32 1, %s9
  %s12 = scalar_select 0, %s11, %s9
  $region1: #{tpu_custom_call.1} parent=0
    #allocation2 [shape = 'u8[65536]{0}', space=vmem, size = 0x10000, scoped, tag = 'input window, operand 0']
    #allocation3 [shape = 's32[2]{0}', space=sflag, size = 0x8, scoped, tag = 'scoped memory for tpu_custom_call.1']
    #allocation4 [shape = 's32[2]{0}', space=sflag, size = 0x8, scoped, tag = 'scoped memory for tpu_custom_call.1']
    #allocation5 [shape = 'u8[65536]{0}', space=vmem, size = 0x10000, scoped, tag = 'output window, operand 0']
    #allocation6 [shape = 'u8[32768]{0}', space=vmem, size = 0x8000, scoped, tag = 'output window, operand 1']
    #allocation7 [shape = 's32[2]{0}', space=sflag, size = 0x8, scoped, tag = 'scoped memory for tpu_custom_call.1']
    %13 = vsyncpa [#allocation3], 0
    %s14 = scalar_lea.sflag [#allocation3], 1
    %15 = vsyncpa %s14, 0
    %16 = vsyncpa [#allocation4], 0
    %s17 = scalar_lea.sflag [#allocation4], 1
    %18 = vsyncpa %s17, 0
    %19 = vsyncpa [#allocation7], 0
    %s20 = scalar_lea.sflag [#allocation7], 1
    %21 = vsyncpa %s20, 0
    loop: start=0, step=1, limit=4
    $region2: #{tpu_custom_call.1} parent=1 // loop_pre_header
      _
    $region3: #{tpu_custom_call.1} parent=1 // loop_header
      %s23 = sphi 0, %s27
      %p24 = scmp.ge.s32.totalorder %s23, 4
      %s33 = sphi 0, %s35
      %s36 = sphi 0, %s33
      %s37 = sphi 0, %s36
      %s53 = sphi 0, %s37
      %s59 = sphi 0, %s61
      %s62 = sphi 0, %s59
      %s63 = sphi 0, %s62
      %s79 = sphi 0, %s63
      %s85 = sphi 0, %s87
      %s88 = sphi 0, %s85
      %s89 = sphi 0, %s88
      %s105 = sphi 0, %s89
      %s111 = sphi 0, %s113
      %s114 = sphi 0, %s111
      %s115 = sphi 0, %s114
      %s131 = sphi 0, %s115
      %s137 = sphi 0, %s139
      %s140 = sphi 0, %s137
      %s141 = sphi 0, %s140
      %s157 = sphi 0, %s141
      %s163 = sphi 0, %s165
      %s166 = sphi 0, %s163
      %s167 = sphi 0, %s166
      %s183 = sphi 0, %s167
      %s189 = sphi 0, %s191
      %s192 = sphi 0, %s189
      %s193 = sphi 0, %s192
      %s209 = sphi 0, %s193
      %s215 = sphi 0, %s217
      %s218 = sphi 0, %s215
      %s219 = sphi 0, %s218
      %s235 = sphi 0, %s219
    $region4: #{tpu_custom_call.1} parent=1 // loop_header_branch
      %26 = sbr.rel (%p24) target = $region8
    $region5: #{tpu_custom_call.1} parent=1 // loop_body
      %s28 = ssub.s32 %s23, 1
      %s29 = ssub.s32 %s23, 2
      %s30 = sadd.s32 %s23, 1
      %s31 = ssub.s32 %s23, %s30
      %p32 = scmp.eq.s32.totalorder %s31, 0
      %s34 = sadd.s32 %s33, 1
      %s35 = scalar_select %p32, %s33, %s34
      %p38 = pneg %p32
      %p39 = scmp.eq.s32.totalorder %s23, 1
      %p40 = por %p38, %p39
      %p41 = scmp.ne.s32.totalorder %s33, %s36
      %p42 = scmp.eq.s32.totalorder %s23, 0
      %p43 = por %p41, %p42
      %p44 = scmp.ne.s32.totalorder %s33, %s36
      %p45 = scmp.eq.s32.totalorder %s28, 1
      %p46 = por %p44, %p45
      %p47 = scmp.ne.s32.totalorder %s36, %s37
      %p48 = scmp.eq.s32.totalorder %s28, 0
      %p49 = por %p47, %p48
      %p50 = scmp.ne.s32.totalorder %s36, %s37
      %p51 = scmp.eq.s32.totalorder %s29, 1
      %p52 = por %p50, %p51
      %p54 = scmp.ne.s32.totalorder %s37, %s53
      %p55 = scmp.eq.s32.totalorder %s29, 0
      %p56 = por %p54, %p55
      %s57 = ssub.s32 %s23, %s30
      %p58 = scmp.eq.s32.totalorder %s57, 0
      %s60 = sadd.s32 %s59, 1
      %s61 = scalar_select %p58, %s59, %s60
      %p64 = pneg %p58
      %p65 = scmp.eq.s32.totalorder %s23, 1
      %p66 = por %p64, %p65
      %p67 = scmp.ne.s32.totalorder %s59, %s62
      %p68 = scmp.eq.s32.totalorder %s23, 0
      %p69 = por %p67, %p68
      %p70 = scmp.ne.s32.totalorder %s59, %s62
      %p71 = scmp.eq.s32.totalorder %s28, 1
      %p72 = por %p70, %p71
      %p73 = scmp.ne.s32.totalorder %s62, %s63
      %p74 = scmp.eq.s32.totalorder %s28, 0
      %p75 = por %p73, %p74
      %p76 = scmp.ne.s32.totalorder %s62, %s63
      %p77 = scmp.eq.s32.totalorder %s29, 1
      %p78 = por %p76, %p77
      %p80 = scmp.ne.s32.totalorder %s63, %s79
      %p81 = scmp.eq.s32.totalorder %s29, 0
      %p82 = por %p80, %p81
      %s83 = ssub.s32 %s23, %s30
      %p84 = scmp.eq.s32.totalorder %s83, 0
      %s86 = sadd.s32 %s85, 1
      %s87 = scalar_select %p84, %s85, %s86
      %p90 = pneg %p84
      %p91 = scmp.eq.s32.totalorder %s23, 1
      %p92 = por %p90, %p91
      %p93 = scmp.ne.s32.totalorder %s85, %s88
      %p94 = scmp.eq.s32.totalorder %s23, 0
      %p95 = por %p93, %p94
      %p96 = scmp.ne.s32.totalorder %s85, %s88
      %p97 = scmp.eq.s32.totalorder %s28, 1
      %p98 = por %p96, %p97
      %p99 = scmp.ne.s32.totalorder %s88, %s89
      %p100 = scmp.eq.s32.totalorder %s28, 0
      %p101 = por %p99, %p100
      %p102 = scmp.ne.s32.totalorder %s88, %s89
      %p103 = scmp.eq.s32.totalorder %s29, 1
      %p104 = por %p102, %p103
      %p106 = scmp.ne.s32.totalorder %s89, %s105
      %p107 = scmp.eq.s32.totalorder %s29, 0
      %p108 = por %p106, %p107
      %s109 = ssub.s32 %s23, %s30
      %p110 = scmp.eq.s32.totalorder %s109, 0
      %s112 = sadd.s32 %s111, 1
      %s113 = scalar_select %p110, %s111, %s112
      %p116 = pneg %p110
      %p117 = scmp.eq.s32.totalorder %s23, 1
      %p118 = por %p116, %p117
      %p119 = scmp.ne.s32.totalorder %s111, %s114
      %p120 = scmp.eq.s32.totalorder %s23, 0
      %p121 = por %p119, %p120
      %p122 = scmp.ne.s32.totalorder %s111, %s114
      %p123 = scmp.eq.s32.totalorder %s28, 1
      %p124 = por %p122, %p123
      %p125 = scmp.ne.s32.totalorder %s114, %s115
      %p126 = scmp.eq.s32.totalorder %s28, 0
      %p127 = por %p125, %p126
      %p128 = scmp.ne.s32.totalorder %s114, %s115
      %p129 = scmp.eq.s32.totalorder %s29, 1
      %p130 = por %p128, %p129
      %p132 = scmp.ne.s32.totalorder %s115, %s131
      %p133 = scmp.eq.s32.totalorder %s29, 0
      %p134 = por %p132, %p133
      %s135 = ssub.s32 %s23, %s30
      %p136 = scmp.eq.s32.totalorder %s135, 0
      %s138 = sadd.s32 %s137, 1
      %s139 = scalar_select %p136, %s137, %s138
      %p142 = pneg %p136
      %p143 = scmp.eq.s32.totalorder %s23, 1
      %p144 = por %p142, %p143
      %p145 = scmp.ne.s32.totalorder %s137, %s140
      %p146 = scmp.eq.s32.totalorder %s23, 0
      %p147 = por %p145, %p146
      %p148 = scmp.ne.s32.totalorder %s137, %s140
      %p149 = scmp.eq.s32.totalorder %s28, 1
      %p150 = por %p148, %p149
      %p151 = scmp.ne.s32.totalorder %s140, %s141
      %p152 = scmp.eq.s32.totalorder %s28, 0
      %p153 = por %p151, %p152
      %p154 = scmp.ne.s32.totalorder %s140, %s141
      %p155 = scmp.eq.s32.totalorder %s29, 1
      %p156 = por %p154, %p155
      %p158 = scmp.ne.s32.totalorder %s141, %s157
      %p159 = scmp.eq.s32.totalorder %s29, 0
      %p160 = por %p158, %p159
      %s161 = ssub.s32 %s23, %s30
      %p162 = scmp.eq.s32.totalorder %s161, 0
      %s164 = sadd.s32 %s163, 1
      %s165 = scalar_select %p162, %s163, %s164
      %p168 = pneg %p162
      %p169 = scmp.eq.s32.totalorder %s23, 1
      %p170 = por %p168, %p169
      %p171 = scmp.ne.s32.totalorder %s163, %s166
      %p172 = scmp.eq.s32.totalorder %s23, 0
      %p173 = por %p171, %p172
      %p174 = scmp.ne.s32.totalorder %s163, %s166
      %p175 = scmp.eq.s32.totalorder %s28, 1
      %p176 = por %p174, %p175
      %p177 = scmp.ne.s32.totalorder %s166, %s167
      %p178 = scmp.eq.s32.totalorder %s28, 0
      %p179 = por %p177, %p178
      %p180 = scmp.ne.s32.totalorder %s166, %s167
      %p181 = scmp.eq.s32.totalorder %s29, 1
      %p182 = por %p180, %p181
      %p184 = scmp.ne.s32.totalorder %s167, %s183
      %p185 = scmp.eq.s32.totalorder %s29, 0
      %p186 = por %p184, %p185
      %s187 = ssub.s32 %s23, %s30
      %p188 = scmp.eq.s32.totalorder %s187, 0
      %s190 = sadd.s32 %s189, 1
      %s191 = scalar_select %p188, %s189, %s190
      %p194 = pneg %p188
      %p195 = scmp.eq.s32.totalorder %s23, 1
      %p196 = por %p194, %p195
      %p197 = scmp.ne.s32.totalorder %s189, %s192
      %p198 = scmp.eq.s32.totalorder %s23, 0
      %p199 = por %p197, %p198
      %p200 = scmp.ne.s32.totalorder %s189, %s192
      %p201 = scmp.eq.s32.totalorder %s28, 1
      %p202 = por %p200, %p201
      %p203 = scmp.ne.s32.totalorder %s192, %s193
      %p204 = scmp.eq.s32.totalorder %s28, 0
      %p205 = por %p203, %p204
      %p206 = scmp.ne.s32.totalorder %s192, %s193
      %p207 = scmp.eq.s32.totalorder %s29, 1
      %p208 = por %p206, %p207
      %p210 = scmp.ne.s32.totalorder %s193, %s209
      %p211 = scmp.eq.s32.totalorder %s29, 0
      %p212 = por %p210, %p211
      %s213 = ssub.s32 %s23, %s30
      %p214 = scmp.eq.s32.totalorder %s213, 0
      %s216 = sadd.s32 %s215, 1
      %s217 = scalar_select %p214, %s215, %s216
      %p220 = pneg %p214
      %p221 = scmp.eq.s32.totalorder %s23, 1
      %p222 = por %p220, %p221
      %p223 = scmp.ne.s32.totalorder %s215, %s218
      %p224 = scmp.eq.s32.totalorder %s23, 0
      %p225 = por %p223, %p224
      %p226 = scmp.ne.s32.totalorder %s215, %s218
      %p227 = scmp.eq.s32.totalorder %s28, 1
      %p228 = por %p226, %p227
      %p229 = scmp.ne.s32.totalorder %s218, %s219
      %p230 = scmp.eq.s32.totalorder %s28, 0
      %p231 = por %p229, %p230
      %p232 = scmp.ne.s32.totalorder %s218, %s219
      %p233 = scmp.eq.s32.totalorder %s29, 1
      %p234 = por %p232, %p233
      %p236 = scmp.ne.s32.totalorder %s219, %s235
      %p237 = scmp.eq.s32.totalorder %s29, 0
      %p238 = por %p236, %p237
      %p239 = scmp.le.s32.totalorder 1, %s23
      %p240 = scmp.lt.s32.totalorder %s23, 3
      %p241 = pnand %p239, %p240
      %p242 = pneg %p241
      // Predicated region
      $region9: #{tpu_custom_call.1} parent=5 // pred_check
        _
      $region10: #{tpu_custom_call.1} parent=5 // pred_check_branch
        %244 = sbr.rel (%p241) target = $region12
      $region11: #{tpu_custom_call.1} parent=5 // pred_region
        %s245 = ssub.s32 %s23, 1
      $region12: #{tpu_custom_call.1} parent=5 // pred_fallthru
        _
      %p246 = scmp.lt.s32.totalorder %s23, 2
      // Predicated region
      $region13: #{tpu_custom_call.1} parent=5 // pred_check
        %p247 = pneg %p246
      $region14: #{tpu_custom_call.1} parent=5 // pred_check_branch
        %249 = sbr.rel (%p247) target = $region16
      $region15: #{tpu_custom_call.1} parent=5 // pred_region
        // Predicated region
        $region17: #{tpu_custom_call.1} parent=15 // pred_check
          %p250 = pneg %p43
        $region18: #{tpu_custom_call.1} parent=15 // pred_check_branch
          %252 = sbr.rel (%p250) target = $region20
        $region19: #{tpu_custom_call.1} parent=15 // pred_region
          %s253 = sand.u32 %s33, 1
          %s254 = scalar_lea.sflag [#allocation3], %s253
          %s255 = sand.u32 %s33, 1
          %s256 = smul.addr %s255, 64
          %s257 = scalar_lea.vmem [#allocation2], %s256
          %s258 = smul.u32 4, %s23
          %s260 = ssub.s32 1024, 1024
          %261 = vsyncadd %s254, %s260
          %s262 = smul.addr %s258, 2
          %s263 = smul.addr %s262, 128
          %s264 = scalar_lea.hbm %s0, %s263
          %s265 = sshll.u32 %s257, 4
          %s266 = int_to_ptr.vmem [resolvable:$true] %s265
          %271 = dma.hbm_to_vmem [thread:$0]  %s264, 1024, %s266, %s254, 128, 128, 8
        $region20: #{tpu_custom_call.1} parent=15 // pred_fallthru
          _
        // Predicated region
        $region21: #{tpu_custom_call.1} parent=15 // pred_check
          %p272 = pneg %p69
        $region22: #{tpu_custom_call.1} parent=15 // pred_check_branch
          %274 = sbr.rel (%p272) target = $region24
        $region23: #{tpu_custom_call.1} parent=15 // pred_region
          %s275 = smul.u32 4, %s23
          %p276 = scmp.lt.s32.totalorder %s275, 7
          %s277 = scalar_select %p276, %s275, 7
          %s278 = smul.addr %s277, 8
          %s279 = scalar_lea.vmem %s1, %s278
          %s280 = smul.u32 4, %s23
        $region24: #{tpu_custom_call.1} parent=15 // pred_fallthru
          _
        // Predicated region
        $region25: #{tpu_custom_call.1} parent=15 // pred_check
          %p281 = pneg %p95
        $region26: #{tpu_custom_call.1} parent=15 // pred_check_branch
          %283 = sbr.rel (%p281) target = $region28
        $region27: #{tpu_custom_call.1} parent=15 // pred_region
          %s284 = smul.u32 4, %s23
          %p285 = scmp.lt.s32.totalorder %s284, 7
          %s286 = scalar_select %p285, %s284, 7
          %s287 = smul.addr %s286, 4
          %s288 = scalar_lea.vmem %s2, %s287
          %s289 = smul.u32 4, %s23
        $region28: #{tpu_custom_call.1} parent=15 // pred_fallthru
          _
        // Predicated region
        $region29: #{tpu_custom_call.1} parent=15 // pred_check
          %p290 = pneg %p121
        $region30: #{tpu_custom_call.1} parent=15 // pred_check_branch
          %292 = sbr.rel (%p290) target = $region32
        $region31: #{tpu_custom_call.1} parent=15 // pred_region
          %s293 = smul.u32 4, %s23
          %p294 = scmp.lt.s32.totalorder %s293, 7
          %s295 = scalar_select %p294, %s293, 7
          %s296 = smul.addr %s295, 2
          %s297 = scalar_lea.vmem %s3, %s296
          %s298 = smul.u32 4, %s23
        $region32: #{tpu_custom_call.1} parent=15 // pred_fallthru
          _
      $region16: #{tpu_custom_call.1} parent=5 // pred_fallthru
        _
      %p299 = scmp.le.s32.totalorder 1, %s23
      %p300 = scmp.lt.s32.totalorder %s23, 3
      %p301 = pnand %p299, %p300
      %p302 = pneg %p301
      // Predicated region
      $region33: #{tpu_custom_call.1} parent=5 // pred_check
        _
      $region34: #{tpu_custom_call.1} parent=5 // pred_check_branch
        %304 = sbr.rel (%p301) target = $region36
      $region35: #{tpu_custom_call.1} parent=5 // pred_region
        %s305 = ssub.s32 %s23, 1
        %s306 = sand.u32 %s36, 1
        %s307 = scalar_lea.sflag [#allocation3], %s306
        %s308 = sand.u32 %s36, 1
        %s309 = smul.addr %s308, 64
        %s310 = scalar_lea.vmem [#allocation2], %s309
        // Predicated region
        $region37: #{tpu_custom_call.1} parent=35 // pred_check
          %p311 = pneg %p49
        $region38: #{tpu_custom_call.1} parent=35 // pred_check_branch
          %313 = sbr.rel (%p311) target = $region40
        $region39: #{tpu_custom_call.1} parent=35 // pred_region
          %314 = dma.done %s307, 1024
        $region40: #{tpu_custom_call.1} parent=35 // pred_fallthru
          _
        %s315 = sand.u32 %s36, 1
        %s316 = scalar_lea.sflag [#allocation3], %s315
        %s317 = sand.u32 %s36, 1
        %s318 = smul.addr %s317, 64
        %s319 = scalar_lea.vmem [#allocation2], %s318
        %p320 = pneg %p49
        %p321 = pneg %p46
        %s322 = smul.u32 4, %s28
        %p323 = scmp.lt.s32.totalorder %s322, 7
        %s324 = scalar_select %p323, %s322, 7
        %s325 = smul.addr %s324, 8
        %s326 = scalar_lea.vmem %s1, %s325
        %p327 = pneg %p75
        %p328 = pneg %p72
        %s329 = smul.u32 4, %s28
        %p330 = scmp.lt.s32.totalorder %s329, 7
        %s331 = scalar_select %p330, %s329, 7
        %s332 = smul.addr %s331, 4
        %s333 = scalar_lea.vmem %s2, %s332
        %p334 = pneg %p101
        %p335 = pneg %p98
        %s336 = smul.u32 4, %s28
        %p337 = scmp.lt.s32.totalorder %s336, 7
        %s338 = scalar_select %p337, %s336, 7
        %s339 = smul.addr %s338, 2
        %s340 = scalar_lea.vmem %s3, %s339
        %p341 = pneg %p127
        %p342 = pneg %p124
        %p343 = pneg %p153
        %p344 = pneg %p150
        %s345 = sand.u32 %s140, 1
        %s346 = scalar_lea.sflag [#allocation4], %s345
        %s347 = sand.u32 %s140, 1
        %s348 = smul.addr %s347, 64
        %s349 = scalar_lea.vmem [#allocation5], %s348
        %p350 = pneg %p179
        %p351 = pneg %p176
        %s352 = sand.u32 %s166, 1
        %s353 = scalar_lea.sflag [#allocation7], %s352
        %s354 = sand.u32 %s166, 1
        %s355 = smul.addr %s354, 32
        %s356 = scalar_lea.vmem [#allocation6], %s355
        %p357 = pneg %p205
        %p358 = pneg %p202
        %s359 = smul.u32 4, %s28
        %p360 = scmp.lt.s32.totalorder %s359, 7
        %s361 = scalar_select %p360, %s359, 7
        %s362 = smul.addr %s361, 4
        %s363 = scalar_lea.vmem %s6, %s362
        %p364 = pneg %p231
        %p365 = pneg %p228
        %s366 = smul.u32 4, %s28
        %p367 = scmp.lt.s32.totalorder %s366, 7
        %s368 = scalar_select %p367, %s366, 7
        %s369 = smul.addr %s368, 2
        %s370 = scalar_lea.vmem %s7, %s369
        %s371 = smul.u32 4, %s28
        %s372 = smul.u32 4, %s28
        %p373 = scmp.lt.s32.totalorder %s372, 7
        %s374 = scalar_select %p373, %s372, 7
        %s375 = smul.addr %s374, 8
        %s376 = scalar_lea.vmem %s1, %s375
        %s377 = smul.u32 4, %s28
        %s378 = smul.u32 4, %s28
        %p379 = scmp.lt.s32.totalorder %s378, 7
        %s380 = scalar_select %p379, %s378, 7
        %s381 = smul.addr %s380, 4
        %s382 = scalar_lea.vmem %s2, %s381
        %s383 = smul.u32 4, %s28
        %s384 = smul.u32 4, %s28
        %p385 = scmp.lt.s32.totalorder %s384, 7
        %s386 = scalar_select %p385, %s384, 7
        %s387 = smul.addr %s386, 2
        %s388 = scalar_lea.vmem %s3, %s387
        %s389 = smul.u32 4, %s28
        %s390 = smul.u32 4, %s28
        %s391 = smul.u32 4, %s28
        %s392 = smul.u32 4, %s28
        %p393 = scmp.lt.s32.totalorder %s392, 7
        %s394 = scalar_select %p393, %s392, 7
        %s395 = smul.addr %s394, 4
        %s396 = scalar_lea.vmem %s6, %s395
        %s397 = smul.u32 4, %s28
        %s398 = smul.u32 4, %s28
        %p399 = scmp.lt.s32.totalorder %s398, 7
        %s400 = scalar_select %p399, %s398, 7
        %s401 = smul.addr %s400, 2
        %s402 = scalar_lea.vmem %s7, %s401
        %s403 = smul.u32 4, %s28
        %v404 = vld [vmem:[%s382] sm:$0xf]
        %v405 = vld [vmem:[%s382 + $0x4] sm:$0xf]
        %v406 = vld [vmem:[%s382 + $0x8] sm:$0xf]
        %v407 = vld [vmem:[%s382 + $0xc] sm:$0xf]
        %v408 = vld [vmem:[%s310] ss:$4 sm:$0xf]
        %s409 = scalar_lea.vmem %s310, 16 [#allocation2]
        %v410 = vld [vmem:[%s409] ss:$4 sm:$0xf]
        %s411 = scalar_lea.vmem %s310, 32 [#allocation2]
        %v412 = vld [vmem:[%s411] ss:$4 sm:$0xf]
        %s413 = scalar_lea.vmem %s310, 48 [#allocation2]
        %v414 = vld [vmem:[%s413] ss:$4 sm:$0xf]
        %s415 = scalar_lea.vmem %s310, 1 [#allocation2]
        %v416 = vld [vmem:[%s415] ss:$4 sm:$0xf]
        %s417 = scalar_lea.vmem %s310, 17 [#allocation2]
        %v418 = vld [vmem:[%s417] ss:$4 sm:$0xf]
        %s419 = scalar_lea.vmem %s310, 33 [#allocation2]
        %v420 = vld [vmem:[%s419] ss:$4 sm:$0xf]
        %s421 = scalar_lea.vmem %s310, 49 [#allocation2]
        %v422 = vld [vmem:[%s421] ss:$4 sm:$0xf]
        %v423 = vmax.f32 %v408, %v416
        %v424 = vmax.f32 %v410, %v418
        %v425 = vmax.f32 %v412, %v420
        %v426 = vmax.f32 %v414, %v422
        %s427 = scalar_lea.vmem %s310, 2 [#allocation2]
        %v428 = vld [vmem:[%s427] ss:$4 sm:$0xf]
        %s429 = scalar_lea.vmem %s310, 18 [#allocation2]
        %v430 = vld [vmem:[%s429] ss:$4 sm:$0xf]
        %s431 = scalar_lea.vmem %s310, 34 [#allocation2]
        %v432 = vld [vmem:[%s431] ss:$4 sm:$0xf]
        %s433 = scalar_lea.vmem %s310, 50 [#allocation2]
        %v434 = vld [vmem:[%s433] ss:$4 sm:$0xf]
        %v435 = vmax.f32 %v423, %v428
        %v436 = vmax.f32 %v424, %v430
        %v437 = vmax.f32 %v425, %v432
        %v438 = vmax.f32 %v426, %v434
        %s439 = scalar_lea.vmem %s310, 3 [#allocation2]
        %v440 = vld [vmem:[%s439] ss:$4 sm:$0xf]
        %s441 = scalar_lea.vmem %s310, 19 [#allocation2]
        %v442 = vld [vmem:[%s441] ss:$4 sm:$0xf]
        %s443 = scalar_lea.vmem %s310, 35 [#allocation2]
        %v444 = vld [vmem:[%s443] ss:$4 sm:$0xf]
        %s445 = scalar_lea.vmem %s310, 51 [#allocation2]
        %v446 = vld [vmem:[%s445] ss:$4 sm:$0xf]
        %v447 = vmax.f32 %v435, %v440
        %v448 = vmax.f32 %v436, %v442
        %v449 = vmax.f32 %v437, %v444
        %v450 = vmax.f32 %v438, %v446
        %v451 = vlaneseq
        %v452 = vshrl.u32 %v451, 7
        %v453 = vadd.s32 %v452, 8
        %v454 = vlaneseq
        %v455 = vand.u32 %v454, 127
        %v456 = vmul.u32 %v455, 4
        %vm457 = vcmp.eq.s32.totalorder %v452, %v456
        %vm458 = vcmp.eq.s32.totalorder %v453, %v456
        %v459 = vsel %vm457, 1.0, 0.0
        %v460 = vsel %vm458, 1.0, 0.0
        %v465 = vcombine.low %v447, %v448
        %v466 = vcombine.low %v449, %v450
        %vm467 = vcmask 130048
        %v468 = vsel %vm467, %v465, 0
        %v470 = vsel %vm467, %v466, 0
        %472 = vmatprep.subr.mxu0 0.0
        %473 = vmatpush1.msra.mxu0 %v459
        %474 = vmatprep.subr.mxu0 0.0
        %475 = vmatpush1.msra.mxu0 %v460
        %476 = vmatprep.subr.mxu0 0.0
        %477 = vmatpush1.msra.mxu0 0.0
        %478 = vmatprep.subr.mxu0 0.0
        %479 = vmatpush1.msra.mxu0 0.0
        %480 = vmatprep.subr.mxu0 0.0
        %481 = vmatpush1.msra.mxu0 0.0
        %482 = vmatprep.subr.mxu0 0.0
        %483 = vmatpush1.msra.mxu0 0.0
        %484 = vmatprep.subr.mxu0 0.0
        %485 = vmatpush1.msra.mxu0 0.0
        %486 = vmatprep.subr.mxu0 0.0
        %487 = vmatpush1.msra.mxu0 0.0
        %488 = vmatprep.subr.mxu0 0.0
        %489 = vmatpush1.msra.mxu0 0.0
        %490 = vmatprep.subr.mxu0 0.0
        %491 = vmatpush1.msra.mxu0 0.0
        %492 = vmatprep.subr.mxu0 0.0
        %493 = vmatpush1.msra.mxu0 0.0
        %494 = vmatprep.subr.mxu0 0.0
        %495 = vmatpush1.msra.mxu0 0.0
        %496 = vmatprep.subr.mxu0 0.0
        %497 = vmatpush1.msra.mxu0 0.0
        %498 = vmatprep.subr.mxu0 0.0
        %499 = vmatpush1.msra.mxu0 0.0
        %500 = vmatprep.subr.mxu0 0.0
        %501 = vmatpush1.msra.mxu0 0.0
        %502 = vmatprep.subr.mxu0 0.0
        %503 = vmatpush1.msra.mxu0 0.0
        %504 = vmatprep.subr.mxu0 0.0
        %505 = vmatpush1.msra.mxu0 0.0
        %506 = vmatprep.subr.mxu0 0.0
        %507 = vmatpush1.msra.mxu0 0.0
        %508 = vmatprep.subr.mxu0 0.0
        %509 = vmatpush1.msra.mxu0 0.0
        %510 = vmatprep.subr.mxu0 0.0
        %511 = vmatpush1.msra.mxu0 0.0
        %512 = vmatprep.subr.mxu0 0.0
        %513 = vmatpush1.msra.mxu0 0.0
        %514 = vmatprep.subr.mxu0 0.0
        %515 = vmatpush1.msra.mxu0 0.0
        %516 = vmatprep.subr.mxu0 0.0
        %517 = vmatpush1.msra.mxu0 0.0
        %518 = vmatprep.subr.mxu0 0.0
        %519 = vmatpush1.msra.mxu0 0.0
        %520 = vmatprep.subr.mxu0 0.0
        %521 = vmatpush1.msra.mxu0 0.0
        %522 = vmatprep.subr.mxu0 0.0
        %523 = vmatpush1.msra.mxu0 0.0
        %524 = vmatprep.subr.mxu0 0.0
        %525 = vmatpush1.msra.mxu0 0.0
        %526 = vmatprep.subr.mxu0 0.0
        %527 = vmatpush1.msra.mxu0 0.0
        %528 = vmatprep.subr.mxu0 0.0
        %529 = vmatpush1.msra.mxu0 0.0
        %530 = vmatprep.subr.mxu0 0.0
        %531 = vmatpush1.msra.mxu0 0.0
        %532 = vmatprep.subr.mxu0 0.0
        %533 = vmatpush1.msra.mxu0 0.0
        %534 = vmatprep.subr.mxu0 0.0
        %535 = vmatpush1.msra.mxu0 0.0
        %536 = vmatprep.mubr.f32.mxu0 0.0
        %537 = vmatmul.mubr.f32.gmra.mrb[0].mxu0 %v468
        %v538 = vpop.f32.mrb[0].mxu0
        %v539 = vadd.f32 0.0, %v538
        %v540 = vpop.f32.mrb[0].mxu0
        %541 = vmatprep.mubr.f32.mxu0 0.0
        %542 = vmatmul.mubr.f32.gmra.mrb[0].mxu0 %v470
        %v543 = vpop.f32.mrb[0].mxu0
        %v544 = vadd.f32 0.0, %v543
        %v545 = vpop.f32.mrb[0].mxu0
        %546 = vdwg.mxu0
        %v547 = vadd.s32 %v456, 1
        %vm548 = vcmp.eq.s32.totalorder %v452, %v547
        %vm549 = vcmp.eq.s32.totalorder %v453, %v547
        %v550 = vsel %vm548, 1.0, 0.0
        %v551 = vsel %vm549, 1.0, 0.0
        %552 = vmatprep.subr.mxu0 0.0
        %553 = vmatpush1.msra.mxu0 %v550
        %554 = vmatprep.subr.mxu0 0.0
        %555 = vmatpush1.msra.mxu0 %v551
        %556 = vmatprep.subr.mxu0 0.0
        %557 = vmatpush1.msra.mxu0 0.0
        %558 = vmatprep.subr.mxu0 0.0
        %559 = vmatpush1.msra.mxu0 0.0
        %560 = vmatprep.subr.mxu0 0.0
        %561 = vmatpush1.msra.mxu0 0.0
        %562 = vmatprep.subr.mxu0 0.0
        %563 = vmatpush1.msra.mxu0 0.0
        %564 = vmatprep.subr.mxu0 0.0
        %565 = vmatpush1.msra.mxu0 0.0
        %566 = vmatprep.subr.mxu0 0.0
        %567 = vmatpush1.msra.mxu0 0.0
        %568 = vmatprep.subr.mxu0 0.0
        %569 = vmatpush1.msra.mxu0 0.0
        %570 = vmatprep.subr.mxu0 0.0
        %571 = vmatpush1.msra.mxu0 0.0
        %572 = vmatprep.subr.mxu0 0.0
        %573 = vmatpush1.msra.mxu0 0.0
        %574 = vmatprep.subr.mxu0 0.0
        %575 = vmatpush1.msra.mxu0 0.0
        %576 = vmatprep.subr.mxu0 0.0
        %577 = vmatpush1.msra.mxu0 0.0
        %578 = vmatprep.subr.mxu0 0.0
        %579 = vmatpush1.msra.mxu0 0.0
        %580 = vmatprep.subr.mxu0 0.0
        %581 = vmatpush1.msra.mxu0 0.0
        %582 = vmatprep.subr.mxu0 0.0
        %583 = vmatpush1.msra.mxu0 0.0
        %584 = vmatprep.subr.mxu0 0.0
        %585 = vmatpush1.msra.mxu0 0.0
        %586 = vmatprep.subr.mxu0 0.0
        %587 = vmatpush1.msra.mxu0 0.0
        %588 = vmatprep.subr.mxu0 0.0
        %589 = vmatpush1.msra.mxu0 0.0
        %590 = vmatprep.subr.mxu0 0.0
        %591 = vmatpush1.msra.mxu0 0.0
        %592 = vmatprep.subr.mxu0 0.0
        %593 = vmatpush1.msra.mxu0 0.0
        %594 = vmatprep.subr.mxu0 0.0
        %595 = vmatpush1.msra.mxu0 0.0
        %596 = vmatprep.subr.mxu0 0.0
        %597 = vmatpush1.msra.mxu0 0.0
        %598 = vmatprep.subr.mxu0 0.0
        %599 = vmatpush1.msra.mxu0 0.0
        %600 = vmatprep.subr.mxu0 0.0
        %601 = vmatpush1.msra.mxu0 0.0
        %602 = vmatprep.subr.mxu0 0.0
        %603 = vmatpush1.msra.mxu0 0.0
        %604 = vmatprep.subr.mxu0 0.0
        %605 = vmatpush1.msra.mxu0 0.0
        %606 = vmatprep.subr.mxu0 0.0
        %607 = vmatpush1.msra.mxu0 0.0
        %608 = vmatprep.subr.mxu0 0.0
        %609 = vmatpush1.msra.mxu0 0.0
        %610 = vmatprep.subr.mxu0 0.0
        %611 = vmatpush1.msra.mxu0 0.0
        %612 = vmatprep.subr.mxu0 0.0
        %613 = vmatpush1.msra.mxu0 0.0
        %614 = vmatprep.subr.mxu0 0.0
        %615 = vmatpush1.msra.mxu0 0.0
        %616 = vmatprep.mubr.f32.mxu0 0.0
        %617 = vmatmul.mubr.f32.gmra.mrb[0].mxu0 %v468
        %v618 = vpop.f32.mrb[0].mxu0
        %v619 = vadd.f32 0.0, %v618
        %v620 = vpop.f32.mrb[0].mxu0
        %621 = vmatprep.mubr.f32.mxu0 0.0
        %622 = vmatmul.mubr.f32.gmra.mrb[0].mxu0 %v470
        %v623 = vpop.f32.mrb[0].mxu0
        %v624 = vadd.f32 0.0, %v623
        %v625 = vpop.f32.mrb[0].mxu0
        %626 = vdwg.mxu0
        %v627 = vmax.f32 %v539, %v619
        %v628 = vmax.f32 %v544, %v624
        %v629 = vadd.s32 %v456, 2
        %vm630 = vcmp.eq.s32.totalorder %v452, %v629
        %vm631 = vcmp.eq.s32.totalorder %v453, %v629
        %v632 = vsel %vm630, 1.0, 0.0
        %v633 = vsel %vm631, 1.0, 0.0
        %634 = vmatprep.subr.mxu0 0.0
        %635 = vmatpush1.msra.mxu0 %v632
        %636 = vmatprep.subr.mxu0 0.0
        %637 = vmatpush1.msra.mxu0 %v633
        %638 = vmatprep.subr.mxu0 0.0
        %639 = vmatpush1.msra.mxu0 0.0
        %640 = vmatprep.subr.mxu0 0.0
        %641 = vmatpush1.msra.mxu0 0.0
        %642 = vmatprep.subr.mxu0 0.0
        %643 = vmatpush1.msra.mxu0 0.0
        %644 = vmatprep.subr.mxu0 0.0
        %645 = vmatpush1.msra.mxu0 0.0
        %646 = vmatprep.subr.mxu0 0.0
        %647 = vmatpush1.msra.mxu0 0.0
        %648 = vmatprep.subr.mxu0 0.0
        %649 = vmatpush1.msra.mxu0 0.0
        %650 = vmatprep.subr.mxu0 0.0
        %651 = vmatpush1.msra.mxu0 0.0
        %652 = vmatprep.subr.mxu0 0.0
        %653 = vmatpush1.msra.mxu0 0.0
        %654 = vmatprep.subr.mxu0 0.0
        %655 = vmatpush1.msra.mxu0 0.0
        %656 = vmatprep.subr.mxu0 0.0
        %657 = vmatpush1.msra.mxu0 0.0
        %658 = vmatprep.subr.mxu0 0.0
        %659 = vmatpush1.msra.mxu0 0.0
        %660 = vmatprep.subr.mxu0 0.0
        %661 = vmatpush1.msra.mxu0 0.0
        %662 = vmatprep.subr.mxu0 0.0
        %663 = vmatpush1.msra.mxu0 0.0
        %664 = vmatprep.subr.mxu0 0.0
        %665 = vmatpush1.msra.mxu0 0.0
        %666 = vmatprep.subr.mxu0 0.0
        %667 = vmatpush1.msra.mxu0 0.0
        %668 = vmatprep.subr.mxu0 0.0
        %669 = vmatpush1.msra.mxu0 0.0
        %670 = vmatprep.subr.mxu0 0.0
        %671 = vmatpush1.msra.mxu0 0.0
        %672 = vmatprep.subr.mxu0 0.0
        %673 = vmatpush1.msra.mxu0 0.0
        %674 = vmatprep.subr.mxu0 0.0
        %675 = vmatpush1.msra.mxu0 0.0
        %676 = vmatprep.subr.mxu0 0.0
        %677 = vmatpush1.msra.mxu0 0.0
        %678 = vmatprep.subr.mxu0 0.0
        %679 = vmatpush1.msra.mxu0 0.0
        %680 = vmatprep.subr.mxu0 0.0
        %681 = vmatpush1.msra.mxu0 0.0
        %682 = vmatprep.subr.mxu0 0.0
        %683 = vmatpush1.msra.mxu0 0.0
        %684 = vmatprep.subr.mxu0 0.0
        %685 = vmatpush1.msra.mxu0 0.0
        %686 = vmatprep.subr.mxu0 0.0
        %687 = vmatpush1.msra.mxu0 0.0
        %688 = vmatprep.subr.mxu0 0.0
        %689 = vmatpush1.msra.mxu0 0.0
        %690 = vmatprep.subr.mxu0 0.0
        %691 = vmatpush1.msra.mxu0 0.0
        %692 = vmatprep.subr.mxu0 0.0
        %693 = vmatpush1.msra.mxu0 0.0
        %694 = vmatprep.subr.mxu0 0.0
        %695 = vmatpush1.msra.mxu0 0.0
        %696 = vmatprep.subr.mxu0 0.0
        %697 = vmatpush1.msra.mxu0 0.0
        %698 = vmatprep.mubr.f32.mxu0 0.0
        %699 = vmatmul.mubr.f32.gmra.mrb[0].mxu0 %v468
        %v700 = vpop.f32.mrb[0].mxu0
        %v701 = vadd.f32 0.0, %v700
        %v702 = vpop.f32.mrb[0].mxu0
        %703 = vmatprep.mubr.f32.mxu0 0.0
        %704 = vmatmul.mubr.f32.gmra.mrb[0].mxu0 %v470
        %v705 = vpop.f32.mrb[0].mxu0
        %v706 = vadd.f32 0.0, %v705
        %v707 = vpop.f32.mrb[0].mxu0
        %708 = vdwg.mxu0
        %v709 = vmax.f32 %v627, %v701
        %v710 = vmax.f32 %v628, %v706
        %v711 = vadd.s32 %v456, 3
        %vm712 = vcmp.eq.s32.totalorder %v452, %v711
        %vm713 = vcmp.eq.s32.totalorder %v453, %v711
        %v714 = vsel %vm712, 1.0, 0.0
        %v715 = vsel %vm713, 1.0, 0.0
        %716 = vmatprep.subr.mxu0 0.0
        %717 = vmatpush1.msra.mxu0 %v714
        %718 = vmatprep.subr.mxu0 0.0
        %719 = vmatpush1.msra.mxu0 %v715
        %720 = vmatprep.subr.mxu0 0.0
        %721 = vmatpush1.msra.mxu0 0.0
        %722 = vmatprep.subr.mxu0 0.0
        %723 = vmatpush1.msra.mxu0 0.0
        %724 = vmatprep.subr.mxu0 0.0
        %725 = vmatpush1.msra.mxu0 0.0
        %726 = vmatprep.subr.mxu0 0.0
        %727 = vmatpush1.msra.mxu0 0.0
        %728 = vmatprep.subr.mxu0 0.0
        %729 = vmatpush1.msra.mxu0 0.0
        %730 = vmatprep.subr.mxu0 0.0
        %731 = vmatpush1.msra.mxu0 0.0
        %732 = vmatprep.subr.mxu0 0.0
        %733 = vmatpush1.msra.mxu0 0.0
        %734 = vmatprep.subr.mxu0 0.0
        %735 = vmatpush1.msra.mxu0 0.0
        %736 = vmatprep.subr.mxu0 0.0
        %737 = vmatpush1.msra.mxu0 0.0
        %738 = vmatprep.subr.mxu0 0.0
        %739 = vmatpush1.msra.mxu0 0.0
        %740 = vmatprep.subr.mxu0 0.0
        %741 = vmatpush1.msra.mxu0 0.0
        %742 = vmatprep.subr.mxu0 0.0
        %743 = vmatpush1.msra.mxu0 0.0
        %744 = vmatprep.subr.mxu0 0.0
        %745 = vmatpush1.msra.mxu0 0.0
        %746 = vmatprep.subr.mxu0 0.0
        %747 = vmatpush1.msra.mxu0 0.0
        %748 = vmatprep.subr.mxu0 0.0
        %749 = vmatpush1.msra.mxu0 0.0
        %750 = vmatprep.subr.mxu0 0.0
        %751 = vmatpush1.msra.mxu0 0.0
        %752 = vmatprep.subr.mxu0 0.0
        %753 = vmatpush1.msra.mxu0 0.0
        %754 = vmatprep.subr.mxu0 0.0
        %755 = vmatpush1.msra.mxu0 0.0
        %756 = vmatprep.subr.mxu0 0.0
        %757 = vmatpush1.msra.mxu0 0.0
        %758 = vmatprep.subr.mxu0 0.0
        %759 = vmatpush1.msra.mxu0 0.0
        %760 = vmatprep.subr.mxu0 0.0
        %761 = vmatpush1.msra.mxu0 0.0
        %762 = vmatprep.subr.mxu0 0.0
        %763 = vmatpush1.msra.mxu0 0.0
        %764 = vmatprep.subr.mxu0 0.0
        %765 = vmatpush1.msra.mxu0 0.0
        %766 = vmatprep.subr.mxu0 0.0
        %767 = vmatpush1.msra.mxu0 0.0
        %768 = vmatprep.subr.mxu0 0.0
        %769 = vmatpush1.msra.mxu0 0.0
        %770 = vmatprep.subr.mxu0 0.0
        %771 = vmatpush1.msra.mxu0 0.0
        %772 = vmatprep.subr.mxu0 0.0
        %773 = vmatpush1.msra.mxu0 0.0
        %774 = vmatprep.subr.mxu0 0.0
        %775 = vmatpush1.msra.mxu0 0.0
        %776 = vmatprep.subr.mxu0 0.0
        %777 = vmatpush1.msra.mxu0 0.0
        %778 = vmatprep.subr.mxu0 0.0
        %779 = vmatpush1.msra.mxu0 0.0
        %780 = vmatprep.mubr.f32.mxu0 0.0
        %781 = vmatmul.mubr.f32.gmra.mrb[0].mxu0 %v468
        %v782 = vpop.f32.mrb[0].mxu0
        %v783 = vadd.f32 0.0, %v782
        %v784 = vpop.f32.mrb[0].mxu0
        %785 = vmatprep.mubr.f32.mxu0 0.0
        %786 = vmatmul.mubr.f32.gmra.mrb[0].mxu0 %v470
        %v787 = vpop.f32.mrb[0].mxu0
        %v788 = vadd.f32 0.0, %v787
        %v789 = vpop.f32.mrb[0].mxu0
        %790 = vdwg.mxu0
        %v791 = vmax.f32 %v709, %v783
        %v792 = vmax.f32 %v710, %v788
        %v795 = vcombine.high %v791, %v791
        %v796 = vcombine.high %v792, %v792
        %v799 = vadd.f32 %v404, %v791
        %v800 = vadd.f32 %v405, %v795
        %v801 = vadd.f32 %v406, %v792
        %v802 = vadd.f32 %v407, %v796
        %v803 = vld [vmem:[%s376] ss:$2 sm:$0xf]
        %s804 = scalar_lea.vmem %s376, 8
        %v805 = vld [vmem:[%s804] ss:$2 sm:$0xf]
        %s806 = scalar_lea.vmem %s376, 16
        %v807 = vld [vmem:[%s806] ss:$2 sm:$0xf]
        %s808 = scalar_lea.vmem %s376, 24
        %v809 = vld [vmem:[%s808] ss:$2 sm:$0xf]
        %s810 = scalar_lea.vmem %s376, 1
        %v811 = vld [vmem:[%s810] ss:$2 sm:$0xf]
        %s812 = scalar_lea.vmem %s376, 9
        %v813 = vld [vmem:[%s812] ss:$2 sm:$0xf]
        %s814 = scalar_lea.vmem %s376, 17
        %v815 = vld [vmem:[%s814] ss:$2 sm:$0xf]
        %s816 = scalar_lea.vmem %s376, 25
        %v817 = vld [vmem:[%s816] ss:$2 sm:$0xf]
        %v818 = vmax.f32 %v803, %v811
        %v819 = vmax.f32 %v805, %v813
        %v820 = vmax.f32 %v807, %v815
        %v821 = vmax.f32 %v809, %v817
        %v822 = vmul.u32 %v455, 2
        %vm823 = vcmp.eq.s32.totalorder %v452, %v822
        %v824 = vsel %vm823, 1.0, 0.0
        %v829 = vcombine.low %v818, %v819
        %v830 = vcombine.low %v820, %v821
        %vm831 = vcmask 64512
        %v832 = vsel %vm831, %v829, 0
        %v834 = vsel %vm831, %v830, 0
        %836 = vmatprep.subr.mxu0 0.0
        %837 = vmatpush1.msra.mxu0 %v824
        %838 = vmatprep.subr.mxu0 0.0
        %839 = vmatpush1.msra.mxu0 0.0
        %840 = vmatprep.subr.mxu0 0.0
        %841 = vmatpush1.msra.mxu0 0.0
        %842 = vmatprep.subr.mxu0 0.0
        %843 = vmatpush1.msra.mxu0 0.0
        %844 = vmatprep.subr.mxu0 0.0
        %845 = vmatpush1.msra.mxu0 0.0
        %846 = vmatprep.subr.mxu0 0.0
        %847 = vmatpush1.msra.mxu0 0.0
        %848 = vmatprep.subr.mxu0 0.0
        %849 = vmatpush1.msra.mxu0 0.0
        %850 = vmatprep.subr.mxu0 0.0
        %851 = vmatpush1.msra.mxu0 0.0
        %852 = vmatprep.subr.mxu0 0.0
        %853 = vmatpush1.msra.mxu0 0.0
        %854 = vmatprep.subr.mxu0 0.0
        %855 = vmatpush1.msra.mxu0 0.0
        %856 = vmatprep.subr.mxu0 0.0
        %857 = vmatpush1.msra.mxu0 0.0
        %858 = vmatprep.subr.mxu0 0.0
        %859 = vmatpush1.msra.mxu0 0.0
        %860 = vmatprep.subr.mxu0 0.0
        %861 = vmatpush1.msra.mxu0 0.0
        %862 = vmatprep.subr.mxu0 0.0
        %863 = vmatpush1.msra.mxu0 0.0
        %864 = vmatprep.subr.mxu0 0.0
        %865 = vmatpush1.msra.mxu0 0.0
        %866 = vmatprep.subr.mxu0 0.0
        %867 = vmatpush1.msra.mxu0 0.0
        %868 = vmatprep.subr.mxu0 0.0
        %869 = vmatpush1.msra.mxu0 0.0
        %870 = vmatprep.subr.mxu0 0.0
        %871 = vmatpush1.msra.mxu0 0.0
        %872 = vmatprep.subr.mxu0 0.0
        %873 = vmatpush1.msra.mxu0 0.0
        %874 = vmatprep.subr.mxu0 0.0
        %875 = vmatpush1.msra.mxu0 0.0
        %876 = vmatprep.subr.mxu0 0.0
        %877 = vmatpush1.msra.mxu0 0.0
        %878 = vmatprep.subr.mxu0 0.0
        %879 = vmatpush1.msra.mxu0 0.0
        %880 = vmatprep.subr.mxu0 0.0
        %881 = vmatpush1.msra.mxu0 0.0
        %882 = vmatprep.subr.mxu0 0.0
        %883 = vmatpush1.msra.mxu0 0.0
        %884 = vmatprep.subr.mxu0 0.0
        %885 = vmatpush1.msra.mxu0 0.0
        %886 = vmatprep.subr.mxu0 0.0
        %887 = vmatpush1.msra.mxu0 0.0
        %888 = vmatprep.subr.mxu0 0.0
        %889 = vmatpush1.msra.mxu0 0.0
        %890 = vmatprep.subr.mxu0 0.0
        %891 = vmatpush1.msra.mxu0 0.0
        %892 = vmatprep.subr.mxu0 0.0
        %893 = vmatpush1.msra.mxu0 0.0
        %894 = vmatprep.subr.mxu0 0.0
        %895 = vmatpush1.msra.mxu0 0.0
        %896 = vmatprep.subr.mxu0 0.0
        %897 = vmatpush1.msra.mxu0 0.0
        %898 = vmatprep.subr.mxu0 0.0
        %899 = vmatpush1.msra.mxu0 0.0
        %900 = vmatprep.mubr.f32.mxu0 0.0
        %901 = vmatmul.mubr.f32.gmra.mrb[0].mxu0 %v832
        %v902 = vpop.f32.mrb[0].mxu0
        %v903 = vadd.f32 0.0, %v902
        %v904 = vpop.f32.mrb[0].mxu0
        %905 = vmatprep.mubr.f32.mxu0 0.0
        %906 = vmatmul.mubr.f32.gmra.mrb[0].mxu0 %v834
        %v907 = vpop.f32.mrb[0].mxu0
        %v908 = vadd.f32 0.0, %v907
        %v909 = vpop.f32.mrb[0].mxu0
        %910 = vdwg.mxu0
        %v911 = vadd.s32 %v822, 1
        %vm912 = vcmp.eq.s32.totalorder %v452, %v911
        %v913 = vsel %vm912, 1.0, 0.0
        %914 = vmatprep.subr.mxu0 0.0
        %915 = vmatpush1.msra.mxu0 %v913
        %916 = vmatprep.subr.mxu0 0.0
        %917 = vmatpush1.msra.mxu0 0.0
        %918 = vmatprep.subr.mxu0 0.0
        %919 = vmatpush1.msra.mxu0 0.0
        %920 = vmatprep.subr.mxu0 0.0
        %921 = vmatpush1.msra.mxu0 0.0
        %922 = vmatprep.subr.mxu0 0.0
        %923 = vmatpush1.msra.mxu0 0.0
        %924 = vmatprep.subr.mxu0 0.0
        %925 = vmatpush1.msra.mxu0 0.0
        %926 = vmatprep.subr.mxu0 0.0
        %927 = vmatpush1.msra.mxu0 0.0
        %928 = vmatprep.subr.mxu0 0.0
        %929 = vmatpush1.msra.mxu0 0.0
        %930 = vmatprep.subr.mxu0 0.0
        %931 = vmatpush1.msra.mxu0 0.0
        %932 = vmatprep.subr.mxu0 0.0
        %933 = vmatpush1.msra.mxu0 0.0
        %934 = vmatprep.subr.mxu0 0.0
        %935 = vmatpush1.msra.mxu0 0.0
        %936 = vmatprep.subr.mxu0 0.0
        %937 = vmatpush1.msra.mxu0 0.0
        %938 = vmatprep.subr.mxu0 0.0
        %939 = vmatpush1.msra.mxu0 0.0
        %940 = vmatprep.subr.mxu0 0.0
        %941 = vmatpush1.msra.mxu0 0.0
        %942 = vmatprep.subr.mxu0 0.0
        %943 = vmatpush1.msra.mxu0 0.0
        %944 = vmatprep.subr.mxu0 0.0
        %945 = vmatpush1.msra.mxu0 0.0
        %946 = vmatprep.subr.mxu0 0.0
        %947 = vmatpush1.msra.mxu0 0.0
        %948 = vmatprep.subr.mxu0 0.0
        %949 = vmatpush1.msra.mxu0 0.0
        %950 = vmatprep.subr.mxu0 0.0
        %951 = vmatpush1.msra.mxu0 0.0
        %952 = vmatprep.subr.mxu0 0.0
        %953 = vmatpush1.msra.mxu0 0.0
        %954 = vmatprep.subr.mxu0 0.0
        %955 = vmatpush1.msra.mxu0 0.0
        %956 = vmatprep.subr.mxu0 0.0
        %957 = vmatpush1.msra.mxu0 0.0
        %958 = vmatprep.subr.mxu0 0.0
        %959 = vmatpush1.msra.mxu0 0.0
        %960 = vmatprep.subr.mxu0 0.0
        %961 = vmatpush1.msra.mxu0 0.0
        %962 = vmatprep.subr.mxu0 0.0
        %963 = vmatpush1.msra.mxu0 0.0
        %964 = vmatprep.subr.mxu0 0.0
        %965 = vmatpush1.msra.mxu0 0.0
        %966 = vmatprep.subr.mxu0 0.0
        %967 = vmatpush1.msra.mxu0 0.0
        %968 = vmatprep.subr.mxu0 0.0
        %969 = vmatpush1.msra.mxu0 0.0
        %970 = vmatprep.subr.mxu0 0.0
        %971 = vmatpush1.msra.mxu0 0.0
        %972 = vmatprep.subr.mxu0 0.0
        %973 = vmatpush1.msra.mxu0 0.0
        %974 = vmatprep.subr.mxu0 0.0
        %975 = vmatpush1.msra.mxu0 0.0
        %976 = vmatprep.subr.mxu0 0.0
        %977 = vmatpush1.msra.mxu0 0.0
        %978 = vmatprep.mubr.f32.mxu0 0.0
        %979 = vmatmul.mubr.f32.gmra.mrb[0].mxu0 %v832
        %v980 = vpop.f32.mrb[0].mxu0
        %v981 = vadd.f32 0.0, %v980
        %v982 = vpop.f32.mrb[0].mxu0
        %983 = vmatprep.mubr.f32.mxu0 0.0
        %984 = vmatmul.mubr.f32.gmra.mrb[0].mxu0 %v834
        %v985 = vpop.f32.mrb[0].mxu0
        %v986 = vadd.f32 0.0, %v985
        %v987 = vpop.f32.mrb[0].mxu0
        %988 = vdwg.mxu0
        %v989 = vmax.f32 %v903, %v981
        %v990 = vmax.f32 %v908, %v986
        %v993 = vcombine.high %v989, %v989
        %v994 = vcombine.high %v990, %v990
        %v997 = vadd.f32 %v799, %v989
        %v998 = vadd.f32 %v800, %v993
        %v999 = vadd.f32 %v801, %v990
        %v1000 = vadd.f32 %v802, %v994
        %v1001 = vld [vmem:[%s388] sm:$0x3]
        %v1002 = vld [vmem:[%s388 + $0x2] sm:$0x3]
        %v1003 = vld [vmem:[%s388 + $0x4] sm:$0x3]
        %v1004 = vld [vmem:[%s388 + $0x6] sm:$0x3]
        %v1005 = vmul.u32 %v452, 2
        %vm1006 = vcmp.ge.s32.totalorder %v455, %v1005
        %v1007 = vadd.s32 %v1005, 2
        %vm1008 = vcmp.lt.s32.totalorder %v455, %v1007
        %vm1009 = vmand %vm1006, %vm1008
        %v1010 = vsel %vm1009, 1.0, 0.0
        %v1015 = vcombine.low %v1001, %v1002
        %v1016 = vcombine.low %v1003, %v1004
        %v1018 = vunpack.c.l.s4 1983009808
        %v1019 = vunpack.c.0.s8 %v1018
        %v1020 = vlaneseq
        %v1021 = vshrl.u32 %v1020, 7
        %v1022 = vsub.s32 %v1019, %v1021
        %v1023 = vrot.slane %v1015, %v1022
        %v1025 = vunpack.c.l.s4 1983009808
        %v1026 = vunpack.c.0.s8 %v1025
        %v1027 = vlaneseq
        %v1028 = vshrl.u32 %v1027, 7
        %v1029 = vsub.s32 %v1026, %v1028
        %v1030 = vrot.slane %v1016, %v1029
        %v1031 = vcombine.low %v1023, %v1030
        %vm1032 = vcmask 15360
        %v1033 = vsel %vm1032, %v1031, 0
        %vm1035 = vcmask 1041408
        %v1037 = vsel %vm1035, %v1010, 0
        %1039 = vmatprep.subr.mxu0 0.0
        %1040 = vmatpush1.msra.mxu0 %v1037
        %1041 = vmatprep.subr.mxu0 0.0
        %1042 = vmatpush1.msra.mxu0 0.0
        %1043 = vmatprep.subr.mxu0 0.0
        %1044 = vmatpush1.msra.mxu0 0.0
        %1045 = vmatprep.subr.mxu0 0.0
        %1046 = vmatpush1.msra.mxu0 0.0
        %1047 = vmatprep.subr.mxu0 0.0
        %1048 = vmatpush1.msra.mxu0 0.0
        %1049 = vmatprep.subr.mxu0 0.0
        %1050 = vmatpush1.msra.mxu0 0.0
        %1051 = vmatprep.subr.mxu0 0.0
        %1052 = vmatpush1.msra.mxu0 0.0
        %1053 = vmatprep.subr.mxu0 0.0
        %1054 = vmatpush1.msra.mxu0 0.0
        %1055 = vmatprep.subr.mxu0 0.0
        %1056 = vmatpush1.msra.mxu0 0.0
        %1057 = vmatprep.subr.mxu0 0.0
        %1058 = vmatpush1.msra.mxu0 0.0
        %1059 = vmatprep.subr.mxu0 0.0
        %1060 = vmatpush1.msra.mxu0 0.0
        %1061 = vmatprep.subr.mxu0 0.0
        %1062 = vmatpush1.msra.mxu0 0.0
        %1063 = vmatprep.subr.mxu0 0.0
        %1064 = vmatpush1.msra.mxu0 0.0
        %1065 = vmatprep.subr.mxu0 0.0
        %1066 = vmatpush1.msra.mxu0 0.0
        %1067 = vmatprep.subr.mxu0 0.0
        %1068 = vmatpush1.msra.mxu0 0.0
        %1069 = vmatprep.subr.mxu0 0.0
        %1070 = vmatpush1.msra.mxu0 0.0
        %1071 = vmatprep.subr.mxu0 0.0
        %1072 = vmatpush1.msra.mxu0 0.0
        %1073 = vmatprep.subr.mxu0 0.0
        %1074 = vmatpush1.msra.mxu0 0.0
        %1075 = vmatprep.subr.mxu0 0.0
        %1076 = vmatpush1.msra.mxu0 0.0
        %1077 = vmatprep.subr.mxu0 0.0
        %1078 = vmatpush1.msra.mxu0 0.0
        %1079 = vmatprep.subr.mxu0 0.0
        %1080 = vmatpush1.msra.mxu0 0.0
        %1081 = vmatprep.subr.mxu0 0.0
        %1082 = vmatpush1.msra.mxu0 0.0
        %1083 = vmatprep.subr.mxu0 0.0
        %1084 = vmatpush1.msra.mxu0 0.0
        %1085 = vmatprep.subr.mxu0 0.0
        %1086 = vmatpush1.msra.mxu0 0.0
        %1087 = vmatprep.subr.mxu0 0.0
        %1088 = vmatpush1.msra.mxu0 0.0
        %1089 = vmatprep.subr.mxu0 0.0
        %1090 = vmatpush1.msra.mxu0 0.0
        %1091 = vmatprep.subr.mxu0 0.0
        %1092 = vmatpush1.msra.mxu0 0.0
        %1093 = vmatprep.subr.mxu0 0.0
        %1094 = vmatpush1.msra.mxu0 0.0
        %1095 = vmatprep.subr.mxu0 0.0
        %1096 = vmatpush1.msra.mxu0 0.0
        %1097 = vmatprep.subr.mxu0 0.0
        %1098 = vmatpush1.msra.mxu0 0.0
        %1099 = vmatprep.subr.mxu0 0.0
        %1100 = vmatpush1.msra.mxu0 0.0
        %1101 = vmatprep.subr.mxu0 0.0
        %1102 = vmatpush1.msra.mxu0 0.0
        %1103 = vmatprep.mubr.f32.mxu0 0.0
        %1104 = vmatmul.mubr.f32.gmra.mrb[0].mxu0 %v1033
        %v1105 = vpop.f32.mrb[0].mxu0
        %v1106 = vadd.f32 0.0, %v1105
        %v1107 = vpop.f32.mrb[0].mxu0
        %1108 = vdwg.mxu0
        %v1110 = vcombine.high %v1106, %v1106
        %v1112 = vunpack.c.l.s4 1966171168
        %v1113 = vunpack.c.0.s8 %v1112
        %v1114 = vlaneseq
        %v1115 = vshrl.u32 %v1114, 7
        %v1116 = vsub.s32 %v1113, %v1115
        %v1117 = vrot.slane %v1106, %v1116
        %v1119 = vunpack.c.l.s4 1966171168
        %v1120 = vunpack.c.0.s8 %v1119
        %v1121 = vlaneseq
        %v1122 = vshrl.u32 %v1121, 7
        %v1123 = vsub.s32 %v1120, %v1122
        %v1124 = vrot.slane %v1110, %v1123
        %v1125 = vcombine.high %v1117, %v1117
        %v1126 = vcombine.high %v1124, %v1124
        %v1128 = vunpack.c.l.s4 1966171168
        %v1129 = vunpack.c.0.s8 %v1128
        %v1130 = vlaneseq
        %v1131 = vshrl.u32 %v1130, 7
        %v1132 = vsub.s32 %v1129, %v1131
        %v1133 = vrot.slane %v1117, %v1132
        %v1135 = vunpack.c.l.s4 1966171168
        %v1136 = vunpack.c.0.s8 %v1135
        %v1137 = vlaneseq
        %v1138 = vshrl.u32 %v1137, 7
        %v1139 = vsub.s32 %v1136, %v1138
        %v1140 = vrot.slane %v1124, %v1139
        %v1142 = vunpack.c.l.s4 1966171168
        %v1143 = vunpack.c.0.s8 %v1142
        %v1144 = vlaneseq
        %v1145 = vshrl.u32 %v1144, 7
        %v1146 = vsub.s32 %v1143, %v1145
        %v1147 = vrot.slane %v1125, %v1146
        %v1149 = vunpack.c.l.s4 1966171168
        %v1150 = vunpack.c.0.s8 %v1149
        %v1151 = vlaneseq
        %v1152 = vshrl.u32 %v1151, 7
        %v1153 = vsub.s32 %v1150, %v1152
        %v1154 = vrot.slane %v1126, %v1153
        %v1155 = vcombine.high %v1133, %v1133
        %v1156 = vcombine.high %v1140, %v1140
        %v1157 = vcombine.high %v1147, %v1147
        %v1158 = vcombine.high %v1154, %v1154
        %v1159 = vlaneseq
        %v1160 = vshrl.u32 %v1159, 7
        %v1161 = vsub.s32 0, %v1160
        %v1162 = vrot.slane %v1133, %v1161
        %v1163 = vlaneseq
        %v1164 = vshrl.u32 %v1163, 7
        %v1165 = vsub.s32 0, %v1164
        %v1166 = vrot.slane %v1147, %v1165
        %v1167 = vlaneseq
        %v1168 = vshrl.u32 %v1167, 7
        %v1169 = vsub.s32 0, %v1168
        %v1170 = vrot.slane %v1155, %v1169
        %v1171 = vlaneseq
        %v1172 = vshrl.u32 %v1171, 7
        %v1173 = vsub.s32 0, %v1172
        %v1174 = vrot.slane %v1157, %v1173
        %v1175 = vlaneseq
        %v1176 = vshrl.u32 %v1175, 7
        %v1177 = vsub.s32 0, %v1176
        %v1178 = vrot.slane %v1140, %v1177
        %v1179 = vlaneseq
        %v1180 = vshrl.u32 %v1179, 7
        %v1181 = vsub.s32 0, %v1180
        %v1182 = vrot.slane %v1154, %v1181
        %v1183 = vlaneseq
        %v1184 = vshrl.u32 %v1183, 7
        %v1185 = vsub.s32 0, %v1184
        %v1186 = vrot.slane %v1156, %v1185
        %v1187 = vlaneseq
        %v1188 = vshrl.u32 %v1187, 7
        %v1189 = vsub.s32 0, %v1188
        %v1190 = vrot.slane %v1158, %v1189
        %v1191 = vcombine.low %v1162, %v1166
        %v1193 = vunpack.c.l.s4 1983009808
        %v1194 = vunpack.c.0.s8 %v1193
        %v1195 = vlaneseq
        %v1196 = vshrl.u32 %v1195, 7
        %v1197 = vsub.s32 %v1194, %v1196
        %v1198 = vrot.slane %v1191, %v1197
        %v1199 = vcombine.low %v1170, %v1174
        %v1201 = vunpack.c.l.s4 1983009808
        %v1202 = vunpack.c.0.s8 %v1201
        %v1203 = vlaneseq
        %v1204 = vshrl.u32 %v1203, 7
        %v1205 = vsub.s32 %v1202, %v1204
        %v1206 = vrot.slane %v1199, %v1205
        %v1207 = vcombine.low %v1178, %v1182
        %v1209 = vunpack.c.l.s4 1983009808
        %v1210 = vunpack.c.0.s8 %v1209
        %v1211 = vlaneseq
        %v1212 = vshrl.u32 %v1211, 7
        %v1213 = vsub.s32 %v1210, %v1212
        %v1214 = vrot.slane %v1207, %v1213
        %v1215 = vcombine.low %v1186, %v1190
        %v1217 = vunpack.c.l.s4 1983009808
        %v1218 = vunpack.c.0.s8 %v1217
        %v1219 = vlaneseq
        %v1220 = vshrl.u32 %v1219, 7
        %v1221 = vsub.s32 %v1218, %v1220
        %v1222 = vrot.slane %v1215, %v1221
        %v1227 = vadd.f32 %v997, %v1198
        %v1228 = vadd.f32 %v998, %v1206
        %v1229 = vadd.f32 %v999, %v1214
        %v1230 = vadd.f32 %v1000, %v1222
        %v1231 = vmul.f32 %v1227, 0.25
        %v1232 = vmul.f32 %v1228, 0.25
        %v1233 = vmul.f32 %v1229, 0.25
        %v1234 = vmul.f32 %v1230, 0.25
        %v1235 = vadd.f32 %v404, %v1231
        %v1236 = vadd.f32 %v405, %v1232
        %v1237 = vadd.f32 %v406, %v1233
        %v1238 = vadd.f32 %v407, %v1234
        %vm1239 = vcmask 27648
        %1240 = vst.msk [vmem:[%s396] sm:$0xf] %vm1239, %v1235
        %1241 = vst.msk [vmem:[%s396 + $0x4] sm:$0xf] %vm1239, %v1236
        %1242 = vst.msk [vmem:[%s396 + $0x8] sm:$0xf] %vm1239, %v1237
        %1243 = vst.msk [vmem:[%s396 + $0xc] sm:$0xf] %vm1239, %v1238
        %v1244 = vld [vmem:[%s310] sm:$0xff]
        %v1245 = vld [vmem:[%s310 + $0x8] sm:$0xff]
        %v1246 = vld [vmem:[%s310 + $0x10] sm:$0xff]
        %v1247 = vld [vmem:[%s310 + $0x18] sm:$0xff]
        %v1248 = vld [vmem:[%s310 + $0x20] sm:$0xff]
        %v1249 = vld [vmem:[%s310 + $0x28] sm:$0xff]
        %v1250 = vld [vmem:[%s310 + $0x30] sm:$0xff]
        %v1251 = vld [vmem:[%s310 + $0x38] sm:$0xff]
        %v1252 = vmul.u32 %v452, 4
        %vm1253 = vcmp.ge.s32.totalorder %v455, %v1252
        %v1254 = vadd.s32 %v1252, 4
        %vm1255 = vcmp.lt.s32.totalorder %v455, %v1254
        %vm1256 = vmand %vm1253, %vm1255
        %v1257 = vsel %vm1256, 1.0, 0.0
        %v1262 = vcombine.low %v1231, %v1232
        %v1263 = vcombine.low %v1233, %v1234
        %vm1264 = vcmask 31744
        %v1265 = vsel %vm1264, %v1262, 0
        %v1267 = vsel %vm1264, %v1263, 0
        %vm1269 = vcmask 1043456
        %v1271 = vsel %vm1269, %v1257, 0
        %1273 = vmatprep.subr.mxu0 0.0
        %1274 = vmatpush1.msra.mxu0 %v1271
        %1275 = vmatprep.subr.mxu0 0.0
        %1276 = vmatpush1.msra.mxu0 0.0
        %1277 = vmatprep.subr.mxu0 0.0
        %1278 = vmatpush1.msra.mxu0 0.0
        %1279 = vmatprep.subr.mxu0 0.0
        %1280 = vmatpush1.msra.mxu0 0.0
        %1281 = vmatprep.subr.mxu0 0.0
        %1282 = vmatpush1.msra.mxu0 0.0
        %1283 = vmatprep.subr.mxu0 0.0
        %1284 = vmatpush1.msra.mxu0 0.0
        %1285 = vmatprep.subr.mxu0 0.0
        %1286 = vmatpush1.msra.mxu0 0.0
        %1287 = vmatprep.subr.mxu0 0.0
        %1288 = vmatpush1.msra.mxu0 0.0
        %1289 = vmatprep.subr.mxu0 0.0
        %1290 = vmatpush1.msra.mxu0 0.0
        %1291 = vmatprep.subr.mxu0 0.0
        %1292 = vmatpush1.msra.mxu0 0.0
        %1293 = vmatprep.subr.mxu0 0.0
        %1294 = vmatpush1.msra.mxu0 0.0
        %1295 = vmatprep.subr.mxu0 0.0
        %1296 = vmatpush1.msra.mxu0 0.0
        %1297 = vmatprep.subr.mxu0 0.0
        %1298 = vmatpush1.msra.mxu0 0.0
        %1299 = vmatprep.subr.mxu0 0.0
        %1300 = vmatpush1.msra.mxu0 0.0
        %1301 = vmatprep.subr.mxu0 0.0
        %1302 = vmatpush1.msra.mxu0 0.0
        %1303 = vmatprep.subr.mxu0 0.0
        %1304 = vmatpush1.msra.mxu0 0.0
        %1305 = vmatprep.subr.mxu0 0.0
        %1306 = vmatpush1.msra.mxu0 0.0
        %1307 = vmatprep.subr.mxu0 0.0
        %1308 = vmatpush1.msra.mxu0 0.0
        %1309 = vmatprep.subr.mxu0 0.0
        %1310 = vmatpush1.msra.mxu0 0.0
        %1311 = vmatprep.subr.mxu0 0.0
        %1312 = vmatpush1.msra.mxu0 0.0
        %1313 = vmatprep.subr.mxu0 0.0
        %1314 = vmatpush1.msra.mxu0 0.0
        %1315 = vmatprep.subr.mxu0 0.0
        %1316 = vmatpush1.msra.mxu0 0.0
        %1317 = vmatprep.subr.mxu0 0.0
        %1318 = vmatpush1.msra.mxu0 0.0
        %1319 = vmatprep.subr.mxu0 0.0
        %1320 = vmatpush1.msra.mxu0 0.0
        %1321 = vmatprep.subr.mxu0 0.0
        %1322 = vmatpush1.msra.mxu0 0.0
        %1323 = vmatprep.subr.mxu0 0.0
        %1324 = vmatpush1.msra.mxu0 0.0
        %1325 = vmatprep.subr.mxu0 0.0
        %1326 = vmatpush1.msra.mxu0 0.0
        %1327 = vmatprep.subr.mxu0 0.0
        %1328 = vmatpush1.msra.mxu0 0.0
        %1329 = vmatprep.subr.mxu0 0.0
        %1330 = vmatpush1.msra.mxu0 0.0
        %1331 = vmatprep.subr.mxu0 0.0
        %1332 = vmatpush1.msra.mxu0 0.0
        %1333 = vmatprep.subr.mxu0 0.0
        %1334 = vmatpush1.msra.mxu0 0.0
        %1335 = vmatprep.subr.mxu0 0.0
        %1336 = vmatpush1.msra.mxu0 0.0
        %1337 = vmatprep.mubr.f32.mxu0 0.0
        %1338 = vmatmul.mubr.f32.gmra.mrb[0].mxu0 %v1265
        %v1339 = vpop.f32.mrb[0].mxu0
        %v1340 = vadd.f32 0.0, %v1339
        %v1341 = vpop.f32.mrb[0].mxu0
        %1342 = vmatprep.mubr.f32.mxu0 0.0
        %1343 = vmatmul.mubr.f32.gmra.mrb[0].mxu0 %v1267
        %v1344 = vpop.f32.mrb[0].mxu0
        %v1345 = vadd.f32 0.0, %v1344
        %v1346 = vpop.f32.mrb[0].mxu0
        %1347 = vdwg.mxu0
        %v1350 = vcombine.high %v1340, %v1340
        %v1352 = vunpack.c.l.s4 1966171168
        %v1353 = vunpack.c.0.s8 %v1352
        %v1354 = vlaneseq
        %v1355 = vshrl.u32 %v1354, 7
        %v1356 = vsub.s32 %v1353, %v1355
        %v1357 = vrot.slane %v1340, %v1356
        %v1359 = vunpack.c.l.s4 1966171168
        %v1360 = vunpack.c.0.s8 %v1359
        %v1361 = vlaneseq
        %v1362 = vshrl.u32 %v1361, 7
        %v1363 = vsub.s32 %v1360, %v1362
        %v1364 = vrot.slane %v1350, %v1363
        %v1365 = vcombine.high %v1357, %v1357
        %v1366 = vcombine.high %v1364, %v1364
        %v1368 = vunpack.c.l.s4 1966171168
        %v1369 = vunpack.c.0.s8 %v1368
        %v1370 = vlaneseq
        %v1371 = vshrl.u32 %v1370, 7
        %v1372 = vsub.s32 %v1369, %v1371
        %v1373 = vrot.slane %v1357, %v1372
        %v1375 = vunpack.c.l.s4 1966171168
        %v1376 = vunpack.c.0.s8 %v1375
        %v1377 = vlaneseq
        %v1378 = vshrl.u32 %v1377, 7
        %v1379 = vsub.s32 %v1376, %v1378
        %v1380 = vrot.slane %v1364, %v1379
        %v1382 = vunpack.c.l.s4 1966171168
        %v1383 = vunpack.c.0.s8 %v1382
        %v1384 = vlaneseq
        %v1385 = vshrl.u32 %v1384, 7
        %v1386 = vsub.s32 %v1383, %v1385
        %v1387 = vrot.slane %v1365, %v1386
        %v1389 = vunpack.c.l.s4 1966171168
        %v1390 = vunpack.c.0.s8 %v1389
        %v1391 = vlaneseq
        %v1392 = vshrl.u32 %v1391, 7
        %v1393 = vsub.s32 %v1390, %v1392
        %v1394 = vrot.slane %v1366, %v1393
        %v1395 = vcombine.high %v1373, %v1373
        %v1396 = vcombine.high %v1380, %v1380
        %v1397 = vcombine.high %v1387, %v1387
        %v1398 = vcombine.high %v1394, %v1394
        %v1399 = vcombine.high %v1345, %v1345
        %v1401 = vunpack.c.l.s4 1966171168
        %v1402 = vunpack.c.0.s8 %v1401
        %v1403 = vlaneseq
        %v1404 = vshrl.u32 %v1403, 7
        %v1405 = vsub.s32 %v1402, %v1404
        %v1406 = vrot.slane %v1345, %v1405
        %v1408 = vunpack.c.l.s4 1966171168
        %v1409 = vunpack.c.0.s8 %v1408
        %v1410 = vlaneseq
        %v1411 = vshrl.u32 %v1410, 7
        %v1412 = vsub.s32 %v1409, %v1411
        %v1413 = vrot.slane %v1399, %v1412
        %v1414 = vcombine.high %v1406, %v1406
        %v1415 = vcombine.high %v1413, %v1413
        %v1417 = vunpack.c.l.s4 1966171168
        %v1418 = vunpack.c.0.s8 %v1417
        %v1419 = vlaneseq
        %v1420 = vshrl.u32 %v1419, 7
        %v1421 = vsub.s32 %v1418, %v1420
        %v1422 = vrot.slane %v1406, %v1421
        %v1424 = vunpack.c.l.s4 1966171168
        %v1425 = vunpack.c.0.s8 %v1424
        %v1426 = vlaneseq
        %v1427 = vshrl.u32 %v1426, 7
        %v1428 = vsub.s32 %v1425, %v1427
        %v1429 = vrot.slane %v1413, %v1428
        %v1431 = vunpack.c.l.s4 1966171168
        %v1432 = vunpack.c.0.s8 %v1431
        %v1433 = vlaneseq
        %v1434 = vshrl.u32 %v1433, 7
        %v1435 = vsub.s32 %v1432, %v1434
        %v1436 = vrot.slane %v1414, %v1435
        %v1438 = vunpack.c.l.s4 1966171168
        %v1439 = vunpack.c.0.s8 %v1438
        %v1440 = vlaneseq
        %v1441 = vshrl.u32 %v1440, 7
        %v1442 = vsub.s32 %v1439, %v1441
        %v1443 = vrot.slane %v1415, %v1442
        %v1444 = vcombine.high %v1422, %v1422
        %v1445 = vcombine.high %v1429, %v1429
        %v1446 = vcombine.high %v1436, %v1436
        %v1447 = vcombine.high %v1443, %v1443
        %v1448 = vlaneseq
        %v1449 = vshrl.u32 %v1448, 7
        %v1450 = vsub.s32 0, %v1449
        %v1451 = vrot.slane %v1373, %v1450
        %v1452 = vlaneseq
        %v1453 = vshrl.u32 %v1452, 7
        %v1454 = vsub.s32 0, %v1453
        %v1455 = vrot.slane %v1387, %v1454
        %v1456 = vlaneseq
        %v1457 = vshrl.u32 %v1456, 7
        %v1458 = vsub.s32 0, %v1457
        %v1459 = vrot.slane %v1395, %v1458
        %v1460 = vlaneseq
        %v1461 = vshrl.u32 %v1460, 7
        %v1462 = vsub.s32 0, %v1461
        %v1463 = vrot.slane %v1397, %v1462
        %v1464 = vlaneseq
        %v1465 = vshrl.u32 %v1464, 7
        %v1466 = vsub.s32 0, %v1465
        %v1467 = vrot.slane %v1380, %v1466
        %v1468 = vlaneseq
        %v1469 = vshrl.u32 %v1468, 7
        %v1470 = vsub.s32 0, %v1469
        %v1471 = vrot.slane %v1394, %v1470
        %v1472 = vlaneseq
        %v1473 = vshrl.u32 %v1472, 7
        %v1474 = vsub.s32 0, %v1473
        %v1475 = vrot.slane %v1396, %v1474
        %v1476 = vlaneseq
        %v1477 = vshrl.u32 %v1476, 7
        %v1478 = vsub.s32 0, %v1477
        %v1479 = vrot.slane %v1398, %v1478
        %v1480 = vlaneseq
        %v1481 = vshrl.u32 %v1480, 7
        %v1482 = vsub.s32 0, %v1481
        %v1483 = vrot.slane %v1422, %v1482
        %v1484 = vlaneseq
        %v1485 = vshrl.u32 %v1484, 7
        %v1486 = vsub.s32 0, %v1485
        %v1487 = vrot.slane %v1436, %v1486
        %v1488 = vlaneseq
        %v1489 = vshrl.u32 %v1488, 7
        %v1490 = vsub.s32 0, %v1489
        %v1491 = vrot.slane %v1444, %v1490
        %v1492 = vlaneseq
        %v1493 = vshrl.u32 %v1492, 7
        %v1494 = vsub.s32 0, %v1493
        %v1495 = vrot.slane %v1446, %v1494
        %v1496 = vlaneseq
        %v1497 = vshrl.u32 %v1496, 7
        %v1498 = vsub.s32 0, %v1497
        %v1499 = vrot.slane %v1429, %v1498
        %v1500 = vlaneseq
        %v1501 = vshrl.u32 %v1500, 7
        %v1502 = vsub.s32 0, %v1501
        %v1503 = vrot.slane %v1443, %v1502
        %v1504 = vlaneseq
        %v1505 = vshrl.u32 %v1504, 7
        %v1506 = vsub.s32 0, %v1505
        %v1507 = vrot.slane %v1445, %v1506
        %v1508 = vlaneseq
        %v1509 = vshrl.u32 %v1508, 7
        %v1510 = vsub.s32 0, %v1509
        %v1511 = vrot.slane %v1447, %v1510
        %v1512 = vcombine.low %v1451, %v1455
        %v1513 = vcombine.low %v1459, %v1463
        %v1514 = vcombine.low %v1467, %v1471
        %v1515 = vcombine.low %v1475, %v1479
        %v1516 = vcombine.low %v1483, %v1487
        %v1517 = vcombine.low %v1491, %v1495
        %v1518 = vcombine.low %v1499, %v1503
        %v1519 = vcombine.low %v1507, %v1511
        %v1528 = vadd.f32 %v1244, %v1512
        %v1529 = vadd.f32 %v1245, %v1513
        %v1530 = vadd.f32 %v1246, %v1514
        %v1531 = vadd.f32 %v1247, %v1515
        %v1532 = vadd.f32 %v1248, %v1516
        %v1533 = vadd.f32 %v1249, %v1517
        %v1534 = vadd.f32 %v1250, %v1518
        %v1535 = vadd.f32 %v1251, %v1519
        %1536 = vst.msk [vmem:[%s349] sm:$0xff] %vm467, %v1528
        %1537 = vst.msk [vmem:[%s349 + $0x8] sm:$0xff] %vm467, %v1529
        %1538 = vst.msk [vmem:[%s349 + $0x10] sm:$0xff] %vm467, %v1530
        %1539 = vst.msk [vmem:[%s349 + $0x18] sm:$0xff] %vm467, %v1531
        %1540 = vst.msk [vmem:[%s349 + $0x20] sm:$0xff] %vm467, %v1532
        %1541 = vst.msk [vmem:[%s349 + $0x28] sm:$0xff] %vm467, %v1533
        %1542 = vst.msk [vmem:[%s349 + $0x30] sm:$0xff] %vm467, %v1534
        %1543 = vst.msk [vmem:[%s349 + $0x38] sm:$0xff] %vm467, %v1535
        %v1544 = vld [vmem:[%s376] sm:$0xff]
        %v1545 = vld [vmem:[%s376 + $0x8] sm:$0xff]
        %v1546 = vld [vmem:[%s376 + $0x10] sm:$0xff]
        %v1547 = vld [vmem:[%s376 + $0x18] sm:$0xff]
        %v1548 = vsel %vm1269, %v1010, 0
        %1550 = vmatprep.subr.mxu0 0.0
        %1551 = vmatpush1.msra.mxu0 %v1548
        %1552 = vmatprep.subr.mxu0 0.0
        %1553 = vmatpush1.msra.mxu0 0.0
        %1554 = vmatprep.subr.mxu0 0.0
        %1555 = vmatpush1.msra.mxu0 0.0
        %1556 = vmatprep.subr.mxu0 0.0
        %1557 = vmatpush1.msra.mxu0 0.0
        %1558 = vmatprep.subr.mxu0 0.0
        %1559 = vmatpush1.msra.mxu0 0.0
        %1560 = vmatprep.subr.mxu0 0.0
        %1561 = vmatpush1.msra.mxu0 0.0
        %1562 = vmatprep.subr.mxu0 0.0
        %1563 = vmatpush1.msra.mxu0 0.0
        %1564 = vmatprep.subr.mxu0 0.0
        %1565 = vmatpush1.msra.mxu0 0.0
        %1566 = vmatprep.subr.mxu0 0.0
        %1567 = vmatpush1.msra.mxu0 0.0
        %1568 = vmatprep.subr.mxu0 0.0
        %1569 = vmatpush1.msra.mxu0 0.0
        %1570 = vmatprep.subr.mxu0 0.0
        %1571 = vmatpush1.msra.mxu0 0.0
        %1572 = vmatprep.subr.mxu0 0.0
        %1573 = vmatpush1.msra.mxu0 0.0
        %1574 = vmatprep.subr.mxu0 0.0
        %1575 = vmatpush1.msra.mxu0 0.0
        %1576 = vmatprep.subr.mxu0 0.0
        %1577 = vmatpush1.msra.mxu0 0.0
        %1578 = vmatprep.subr.mxu0 0.0
        %1579 = vmatpush1.msra.mxu0 0.0
        %1580 = vmatprep.subr.mxu0 0.0
        %1581 = vmatpush1.msra.mxu0 0.0
        %1582 = vmatprep.subr.mxu0 0.0
        %1583 = vmatpush1.msra.mxu0 0.0
        %1584 = vmatprep.subr.mxu0 0.0
        %1585 = vmatpush1.msra.mxu0 0.0
        %1586 = vmatprep.subr.mxu0 0.0
        %1587 = vmatpush1.msra.mxu0 0.0
        %1588 = vmatprep.subr.mxu0 0.0
        %1589 = vmatpush1.msra.mxu0 0.0
        %1590 = vmatprep.subr.mxu0 0.0
        %1591 = vmatpush1.msra.mxu0 0.0
        %1592 = vmatprep.subr.mxu0 0.0
        %1593 = vmatpush1.msra.mxu0 0.0
        %1594 = vmatprep.subr.mxu0 0.0
        %1595 = vmatpush1.msra.mxu0 0.0
        %1596 = vmatprep.subr.mxu0 0.0
        %1597 = vmatpush1.msra.mxu0 0.0
        %1598 = vmatprep.subr.mxu0 0.0
        %1599 = vmatpush1.msra.mxu0 0.0
        %1600 = vmatprep.subr.mxu0 0.0
        %1601 = vmatpush1.msra.mxu0 0.0
        %1602 = vmatprep.subr.mxu0 0.0
        %1603 = vmatpush1.msra.mxu0 0.0
        %1604 = vmatprep.subr.mxu0 0.0
        %1605 = vmatpush1.msra.mxu0 0.0
        %1606 = vmatprep.subr.mxu0 0.0
        %1607 = vmatpush1.msra.mxu0 0.0
        %1608 = vmatprep.subr.mxu0 0.0
        %1609 = vmatpush1.msra.mxu0 0.0
        %1610 = vmatprep.subr.mxu0 0.0
        %1611 = vmatpush1.msra.mxu0 0.0
        %1612 = vmatprep.subr.mxu0 0.0
        %1613 = vmatpush1.msra.mxu0 0.0
        %1614 = vmatprep.mubr.f32.mxu0 0.0
        %1615 = vmatmul.mubr.f32.gmra.mrb[0].mxu0 %v1265
        %v1616 = vpop.f32.mrb[0].mxu0
        %v1617 = vadd.f32 0.0, %v1616
        %v1618 = vpop.f32.mrb[0].mxu0
        %1619 = vmatprep.mubr.f32.mxu0 0.0
        %1620 = vmatmul.mubr.f32.gmra.mrb[0].mxu0 %v1267
        %v1621 = vpop.f32.mrb[0].mxu0
        %v1622 = vadd.f32 0.0, %v1621
        %v1623 = vpop.f32.mrb[0].mxu0
        %1624 = vdwg.mxu0
        %v1627 = vcombine.high %v1617, %v1617
        %v1629 = vunpack.c.l.s4 1966171168
        %v1630 = vunpack.c.0.s8 %v1629
        %v1631 = vlaneseq
        %v1632 = vshrl.u32 %v1631, 7
        %v1633 = vsub.s32 %v1630, %v1632
        %v1634 = vrot.slane %v1617, %v1633
        %v1636 = vunpack.c.l.s4 1966171168
        %v1637 = vunpack.c.0.s8 %v1636
        %v1638 = vlaneseq
        %v1639 = vshrl.u32 %v1638, 7
        %v1640 = vsub.s32 %v1637, %v1639
        %v1641 = vrot.slane %v1627, %v1640
        %v1642 = vcombine.high %v1634, %v1634
        %v1643 = vcombine.high %v1641, %v1641
        %v1645 = vunpack.c.l.s4 1966171168
        %v1646 = vunpack.c.0.s8 %v1645
        %v1647 = vlaneseq
        %v1648 = vshrl.u32 %v1647, 7
        %v1649 = vsub.s32 %v1646, %v1648
        %v1650 = vrot.slane %v1634, %v1649
        %v1652 = vunpack.c.l.s4 1966171168
        %v1653 = vunpack.c.0.s8 %v1652
        %v1654 = vlaneseq
        %v1655 = vshrl.u32 %v1654, 7
        %v1656 = vsub.s32 %v1653, %v1655
        %v1657 = vrot.slane %v1641, %v1656
        %v1659 = vunpack.c.l.s4 1966171168
        %v1660 = vunpack.c.0.s8 %v1659
        %v1661 = vlaneseq
        %v1662 = vshrl.u32 %v1661, 7
        %v1663 = vsub.s32 %v1660, %v1662
        %v1664 = vrot.slane %v1642, %v1663
        %v1666 = vunpack.c.l.s4 1966171168
        %v1667 = vunpack.c.0.s8 %v1666
        %v1668 = vlaneseq
        %v1669 = vshrl.u32 %v1668, 7
        %v1670 = vsub.s32 %v1667, %v1669
        %v1671 = vrot.slane %v1643, %v1670
        %v1672 = vcombine.high %v1650, %v1650
        %v1673 = vcombine.high %v1657, %v1657
        %v1674 = vcombine.high %v1664, %v1664
        %v1675 = vcombine.high %v1671, %v1671
        %v1676 = vcombine.high %v1622, %v1622
        %v1678 = vunpack.c.l.s4 1966171168
        %v1679 = vunpack.c.0.s8 %v1678
        %v1680 = vlaneseq
        %v1681 = vshrl.u32 %v1680, 7
        %v1682 = vsub.s32 %v1679, %v1681
        %v1683 = vrot.slane %v1622, %v1682
        %v1685 = vunpack.c.l.s4 1966171168
        %v1686 = vunpack.c.0.s8 %v1685
        %v1687 = vlaneseq
        %v1688 = vshrl.u32 %v1687, 7
        %v1689 = vsub.s32 %v1686, %v1688
        %v1690 = vrot.slane %v1676, %v1689
        %v1691 = vcombine.high %v1683, %v1683
        %v1692 = vcombine.high %v1690, %v1690
        %v1694 = vunpack.c.l.s4 1966171168
        %v1695 = vunpack.c.0.s8 %v1694
        %v1696 = vlaneseq
        %v1697 = vshrl.u32 %v1696, 7
        %v1698 = vsub.s32 %v1695, %v1697
        %v1699 = vrot.slane %v1683, %v1698
        %v1701 = vunpack.c.l.s4 1966171168
        %v1702 = vunpack.c.0.s8 %v1701
        %v1703 = vlaneseq
        %v1704 = vshrl.u32 %v1703, 7
        %v1705 = vsub.s32 %v1702, %v1704
        %v1706 = vrot.slane %v1690, %v1705
        %v1708 = vunpack.c.l.s4 1966171168
        %v1709 = vunpack.c.0.s8 %v1708
        %v1710 = vlaneseq
        %v1711 = vshrl.u32 %v1710, 7
        %v1712 = vsub.s32 %v1709, %v1711
        %v1713 = vrot.slane %v1691, %v1712
        %v1715 = vunpack.c.l.s4 1966171168
        %v1716 = vunpack.c.0.s8 %v1715
        %v1717 = vlaneseq
        %v1718 = vshrl.u32 %v1717, 7
        %v1719 = vsub.s32 %v1716, %v1718
        %v1720 = vrot.slane %v1692, %v1719
        %v1721 = vcombine.high %v1699, %v1699
        %v1722 = vcombine.high %v1706, %v1706
        %v1723 = vcombine.high %v1713, %v1713
        %v1724 = vcombine.high %v1720, %v1720
        %v1725 = vlaneseq
        %v1726 = vshrl.u32 %v1725, 7
        %v1727 = vsub.s32 0, %v1726
        %v1728 = vrot.slane %v1650, %v1727
        %v1729 = vlaneseq
        %v1730 = vshrl.u32 %v1729, 7
        %v1731 = vsub.s32 0, %v1730
        %v1732 = vrot.slane %v1664, %v1731
        %v1733 = vlaneseq
        %v1734 = vshrl.u32 %v1733, 7
        %v1735 = vsub.s32 0, %v1734
        %v1736 = vrot.slane %v1672, %v1735
        %v1737 = vlaneseq
        %v1738 = vshrl.u32 %v1737, 7
        %v1739 = vsub.s32 0, %v1738
        %v1740 = vrot.slane %v1674, %v1739
        %v1741 = vlaneseq
        %v1742 = vshrl.u32 %v1741, 7
        %v1743 = vsub.s32 0, %v1742
        %v1744 = vrot.slane %v1657, %v1743
        %v1745 = vlaneseq
        %v1746 = vshrl.u32 %v1745, 7
        %v1747 = vsub.s32 0, %v1746
        %v1748 = vrot.slane %v1671, %v1747
        %v1749 = vlaneseq
        %v1750 = vshrl.u32 %v1749, 7
        %v1751 = vsub.s32 0, %v1750
        %v1752 = vrot.slane %v1673, %v1751
        %v1753 = vlaneseq
        %v1754 = vshrl.u32 %v1753, 7
        %v1755 = vsub.s32 0, %v1754
        %v1756 = vrot.slane %v1675, %v1755
        %v1757 = vlaneseq
        %v1758 = vshrl.u32 %v1757, 7
        %v1759 = vsub.s32 0, %v1758
        %v1760 = vrot.slane %v1699, %v1759
        %v1761 = vlaneseq
        %v1762 = vshrl.u32 %v1761, 7
        %v1763 = vsub.s32 0, %v1762
        %v1764 = vrot.slane %v1713, %v1763
        %v1765 = vlaneseq
        %v1766 = vshrl.u32 %v1765, 7
        %v1767 = vsub.s32 0, %v1766
        %v1768 = vrot.slane %v1721, %v1767
        %v1769 = vlaneseq
        %v1770 = vshrl.u32 %v1769, 7
        %v1771 = vsub.s32 0, %v1770
        %v1772 = vrot.slane %v1723, %v1771
        %v1773 = vlaneseq
        %v1774 = vshrl.u32 %v1773, 7
        %v1775 = vsub.s32 0, %v1774
        %v1776 = vrot.slane %v1706, %v1775
        %v1777 = vlaneseq
        %v1778 = vshrl.u32 %v1777, 7
        %v1779 = vsub.s32 0, %v1778
        %v1780 = vrot.slane %v1720, %v1779
        %v1781 = vlaneseq
        %v1782 = vshrl.u32 %v1781, 7
        %v1783 = vsub.s32 0, %v1782
        %v1784 = vrot.slane %v1722, %v1783
        %v1785 = vlaneseq
        %v1786 = vshrl.u32 %v1785, 7
        %v1787 = vsub.s32 0, %v1786
        %v1788 = vrot.slane %v1724, %v1787
        %v1789 = vcombine.low %v1728, %v1732
        %v1790 = vcombine.low %v1736, %v1740
        %v1792 = vunpack.c.l.s4 1983009808
        %v1793 = vunpack.c.0.s8 %v1792
        %v1794 = vlaneseq
        %v1795 = vshrl.u32 %v1794, 7
        %v1796 = vsub.s32 %v1793, %v1795
        %v1797 = vrot.slane %v1789, %v1796
        %v1799 = vunpack.c.l.s4 1983009808
        %v1800 = vunpack.c.0.s8 %v1799
        %v1801 = vlaneseq
        %v1802 = vshrl.u32 %v1801, 7
        %v1803 = vsub.s32 %v1800, %v1802
        %v1804 = vrot.slane %v1790, %v1803
        %v1805 = vcombine.low %v1797, %v1804
        %v1806 = vcombine.low %v1744, %v1748
        %v1807 = vcombine.low %v1752, %v1756
        %v1809 = vunpack.c.l.s4 1983009808
        %v1810 = vunpack.c.0.s8 %v1809
        %v1811 = vlaneseq
        %v1812 = vshrl.u32 %v1811, 7
        %v1813 = vsub.s32 %v1810, %v1812
        %v1814 = vrot.slane %v1806, %v1813
        %v1816 = vunpack.c.l.s4 1983009808
        %v1817 = vunpack.c.0.s8 %v1816
        %v1818 = vlaneseq
        %v1819 = vshrl.u32 %v1818, 7
        %v1820 = vsub.s32 %v1817, %v1819
        %v1821 = vrot.slane %v1807, %v1820
        %v1822 = vcombine.low %v1814, %v1821
        %v1823 = vcombine.low %v1760, %v1764
        %v1824 = vcombine.low %v1768, %v1772
        %v1826 = vunpack.c.l.s4 1983009808
        %v1827 = vunpack.c.0.s8 %v1826
        %v1828 = vlaneseq
        %v1829 = vshrl.u32 %v1828, 7
        %v1830 = vsub.s32 %v1827, %v1829
        %v1831 = vrot.slane %v1823, %v1830
        %v1833 = vunpack.c.l.s4 1983009808
        %v1834 = vunpack.c.0.s8 %v1833
        %v1835 = vlaneseq
        %v1836 = vshrl.u32 %v1835, 7
        %v1837 = vsub.s32 %v1834, %v1836
        %v1838 = vrot.slane %v1824, %v1837
        %v1839 = vcombine.low %v1831, %v1838
        %v1840 = vcombine.low %v1776, %v1780
        %v1841 = vcombine.low %v1784, %v1788
        %v1843 = vunpack.c.l.s4 1983009808
        %v1844 = vunpack.c.0.s8 %v1843
        %v1845 = vlaneseq
        %v1846 = vshrl.u32 %v1845, 7
        %v1847 = vsub.s32 %v1844, %v1846
        %v1848 = vrot.slane %v1840, %v1847
        %v1850 = vunpack.c.l.s4 1983009808
        %v1851 = vunpack.c.0.s8 %v1850
        %v1852 = vlaneseq
        %v1853 = vshrl.u32 %v1852, 7
        %v1854 = vsub.s32 %v1851, %v1853
        %v1855 = vrot.slane %v1841, %v1854
        %v1856 = vcombine.low %v1848, %v1855
        %v1861 = vadd.f32 %v1544, %v1805
        %v1862 = vadd.f32 %v1545, %v1822
        %v1863 = vadd.f32 %v1546, %v1839
        %v1864 = vadd.f32 %v1547, %v1856
        %1865 = vst.msk [vmem:[%s356] sm:$0xff] %vm831, %v1861
        %1866 = vst.msk [vmem:[%s356 + $0x8] sm:$0xff] %vm831, %v1862
        %1867 = vst.msk [vmem:[%s356 + $0x10] sm:$0xff] %vm831, %v1863
        %1868 = vst.msk [vmem:[%s356 + $0x18] sm:$0xff] %vm831, %v1864
        %v1869 = vld [vmem:[%s388] sm:$0x3]
        %v1870 = vld [vmem:[%s388 + $0x2] sm:$0x3]
        %v1871 = vld [vmem:[%s388 + $0x4] sm:$0x3]
        %v1872 = vld [vmem:[%s388 + $0x6] sm:$0x3]
        %v1874 = vunpack.c.l.s4 1983009808
        %v1875 = vunpack.c.0.s8 %v1874
        %v1876 = vlaneseq
        %v1877 = vshrl.u32 %v1876, 7
        %v1878 = vsub.s32 %v1875, %v1877
        %v1879 = vrot.slane %v1231, %v1878
        %v1880 = vcombine.high %v1879, %v1879
        %v1882 = vunpack.c.l.s4 1983009808
        %v1883 = vunpack.c.0.s8 %v1882
        %v1884 = vlaneseq
        %v1885 = vshrl.u32 %v1884, 7
        %v1886 = vsub.s32 %v1883, %v1885
        %v1887 = vrot.slane %v1232, %v1886
        %v1888 = vcombine.high %v1887, %v1887
        %v1890 = vunpack.c.l.s4 1983009808
        %v1891 = vunpack.c.0.s8 %v1890
        %v1892 = vlaneseq
        %v1893 = vshrl.u32 %v1892, 7
        %v1894 = vsub.s32 %v1891, %v1893
        %v1895 = vrot.slane %v1233, %v1894
        %v1896 = vcombine.high %v1895, %v1895
        %v1898 = vunpack.c.l.s4 1983009808
        %v1899 = vunpack.c.0.s8 %v1898
        %v1900 = vlaneseq
        %v1901 = vshrl.u32 %v1900, 7
        %v1902 = vsub.s32 %v1899, %v1901
        %v1903 = vrot.slane %v1234, %v1902
        %v1904 = vcombine.high %v1903, %v1903
        %vm1913 = vcmask 25600
        %v1914 = vsel %vm1913, %v1879, -inf
        %v1915 = vrot.slane %v1914, 4
        %v1916 = vmax.f32 %v1914, %v1915
        %v1917 = vrot.slane %v1916, 2
        %v1918 = vmax.f32 %v1916, %v1917
        %v1919 = vrot.slane %v1918, 1
        %v1920 = vmax.f32 %v1918, %v1919
        %v1921 = vsel %vm1913, %v1880, -inf
        %v1922 = vrot.slane %v1921, 4
        %v1923 = vmax.f32 %v1921, %v1922
        %v1924 = vrot.slane %v1923, 2
        %v1925 = vmax.f32 %v1923, %v1924
        %v1926 = vrot.slane %v1925, 1
        %v1927 = vmax.f32 %v1925, %v1926
        %v1928 = vsel %vm1913, %v1887, -inf
        %v1929 = vrot.slane %v1928, 4
        %v1930 = vmax.f32 %v1928, %v1929
        %v1931 = vrot.slane %v1930, 2
        %v1932 = vmax.f32 %v1930, %v1931
        %v1933 = vrot.slane %v1932, 1
        %v1934 = vmax.f32 %v1932, %v1933
        %v1935 = vsel %vm1913, %v1888, -inf
        %v1936 = vrot.slane %v1935, 4
        %v1937 = vmax.f32 %v1935, %v1936
        %v1938 = vrot.slane %v1937, 2
        %v1939 = vmax.f32 %v1937, %v1938
        %v1940 = vrot.slane %v1939, 1
        %v1941 = vmax.f32 %v1939, %v1940
        %v1942 = vsel %vm1913, %v1895, -inf
        %v1943 = vrot.slane %v1942, 4
        %v1944 = vmax.f32 %v1942, %v1943
        %v1945 = vrot.slane %v1944, 2
        %v1946 = vmax.f32 %v1944, %v1945
        %v1947 = vrot.slane %v1946, 1
        %v1948 = vmax.f32 %v1946, %v1947
        %v1949 = vsel %vm1913, %v1896, -inf
        %v1950 = vrot.slane %v1949, 4
        %v1951 = vmax.f32 %v1949, %v1950
        %v1952 = vrot.slane %v1951, 2
        %v1953 = vmax.f32 %v1951, %v1952
        %v1954 = vrot.slane %v1953, 1
        %v1955 = vmax.f32 %v1953, %v1954
        %v1956 = vsel %vm1913, %v1903, -inf
        %v1957 = vrot.slane %v1956, 4
        %v1958 = vmax.f32 %v1956, %v1957
        %v1959 = vrot.slane %v1958, 2
        %v1960 = vmax.f32 %v1958, %v1959
        %v1961 = vrot.slane %v1960, 1
        %v1962 = vmax.f32 %v1960, %v1961
        %v1963 = vsel %vm1913, %v1904, -inf
        %v1964 = vrot.slane %v1963, 4
        %v1965 = vmax.f32 %v1963, %v1964
        %v1966 = vrot.slane %v1965, 2
        %v1967 = vmax.f32 %v1965, %v1966
        %v1968 = vrot.slane %v1967, 1
        %v1969 = vmax.f32 %v1967, %v1968
        %vm1978 = vcmask 1041409
        %v1979 = vsel %vm1978, %v1927, %v1920
        %vm1980 = vcmask 1042434
        %v1981 = vsel %vm1980, %v1934, %v1979
        %vm1982 = vcmask 1043459
        %v1983 = vsel %vm1982, %v1941, %v1981
        %vm1984 = vcmask 1044484
        %v1985 = vsel %vm1984, %v1948, %v1983
        %vm1986 = vcmask 1045509
        %v1987 = vsel %vm1986, %v1955, %v1985
        %vm1988 = vcmask 1046534
        %v1989 = vsel %vm1988, %v1962, %v1987
        %vm1990 = vcmask 1047559
        %v1991 = vsel %vm1990, %v1969, %v1989
        %v1992 = vsel %vm1264, %v1991, 0
        %v1995 = vsel %vm1269, %v824, 0
        %1997 = vmatprep.subr.mxu0 0.0
        %1998 = vmatpush1.msra.mxu0 %v1995
        %1999 = vmatprep.subr.mxu0 0.0
        %2000 = vmatpush1.msra.mxu0 0.0
        %2001 = vmatprep.subr.mxu0 0.0
        %2002 = vmatpush1.msra.mxu0 0.0
        %2003 = vmatprep.subr.mxu0 0.0
        %2004 = vmatpush1.msra.mxu0 0.0
        %2005 = vmatprep.subr.mxu0 0.0
        %2006 = vmatpush1.msra.mxu0 0.0
        %2007 = vmatprep.subr.mxu0 0.0
        %2008 = vmatpush1.msra.mxu0 0.0
        %2009 = vmatprep.subr.mxu0 0.0
        %2010 = vmatpush1.msra.mxu0 0.0
        %2011 = vmatprep.subr.mxu0 0.0
        %2012 = vmatpush1.msra.mxu0 0.0
        %2013 = vmatprep.subr.mxu0 0.0
        %2014 = vmatpush1.msra.mxu0 0.0
        %2015 = vmatprep.subr.mxu0 0.0
        %2016 = vmatpush1.msra.mxu0 0.0
        %2017 = vmatprep.subr.mxu0 0.0
        %2018 = vmatpush1.msra.mxu0 0.0
        %2019 = vmatprep.subr.mxu0 0.0
        %2020 = vmatpush1.msra.mxu0 0.0
        %2021 = vmatprep.subr.mxu0 0.0
        %2022 = vmatpush1.msra.mxu0 0.0
        %2023 = vmatprep.subr.mxu0 0.0
        %2024 = vmatpush1.msra.mxu0 0.0
        %2025 = vmatprep.subr.mxu0 0.0
        %2026 = vmatpush1.msra.mxu0 0.0
        %2027 = vmatprep.subr.mxu0 0.0
        %2028 = vmatpush1.msra.mxu0 0.0
        %2029 = vmatprep.subr.mxu0 0.0
        %2030 = vmatpush1.msra.mxu0 0.0
        %2031 = vmatprep.subr.mxu0 0.0
        %2032 = vmatpush1.msra.mxu0 0.0
        %2033 = vmatprep.subr.mxu0 0.0
        %2034 = vmatpush1.msra.mxu0 0.0
        %2035 = vmatprep.subr.mxu0 0.0
        %2036 = vmatpush1.msra.mxu0 0.0
        %2037 = vmatprep.subr.mxu0 0.0
        %2038 = vmatpush1.msra.mxu0 0.0
        %2039 = vmatprep.subr.mxu0 0.0
        %2040 = vmatpush1.msra.mxu0 0.0
        %2041 = vmatprep.subr.mxu0 0.0
        %2042 = vmatpush1.msra.mxu0 0.0
        %2043 = vmatprep.subr.mxu0 0.0
        %2044 = vmatpush1.msra.mxu0 0.0
        %2045 = vmatprep.subr.mxu0 0.0
        %2046 = vmatpush1.msra.mxu0 0.0
        %2047 = vmatprep.subr.mxu0 0.0
        %2048 = vmatpush1.msra.mxu0 0.0
        %2049 = vmatprep.subr.mxu0 0.0
        %2050 = vmatpush1.msra.mxu0 0.0
        %2051 = vmatprep.subr.mxu0 0.0
        %2052 = vmatpush1.msra.mxu0 0.0
        %2053 = vmatprep.subr.mxu0 0.0
        %2054 = vmatpush1.msra.mxu0 0.0
        %2055 = vmatprep.subr.mxu0 0.0
        %2056 = vmatpush1.msra.mxu0 0.0
        %2057 = vmatprep.subr.mxu0 0.0
        %2058 = vmatpush1.msra.mxu0 0.0
        %2059 = vmatprep.subr.mxu0 0.0
        %2060 = vmatpush1.msra.mxu0 0.0
        %2061 = vmatprep.mubr.f32.mxu0 0.0
        %2062 = vmatmul.mubr.f32.gmra.mrb[0].mxu0 %v1992
        %v2063 = vpop.f32.mrb[0].mxu0
        %v2064 = vadd.f32 0.0, %v2063
        %v2065 = vpop.f32.mrb[0].mxu0
        %2066 = vdwg.mxu0
        %v2068 = vsel %vm1269, %v913, 0
        %2070 = vmatprep.subr.mxu0 0.0
        %2071 = vmatpush1.msra.mxu0 %v2068
        %2072 = vmatprep.subr.mxu0 0.0
        %2073 = vmatpush1.msra.mxu0 0.0
        %2074 = vmatprep.subr.mxu0 0.0
        %2075 = vmatpush1.msra.mxu0 0.0
        %2076 = vmatprep.subr.mxu0 0.0
        %2077 = vmatpush1.msra.mxu0 0.0
        %2078 = vmatprep.subr.mxu0 0.0
        %2079 = vmatpush1.msra.mxu0 0.0
        %2080 = vmatprep.subr.mxu0 0.0
        %2081 = vmatpush1.msra.mxu0 0.0
        %2082 = vmatprep.subr.mxu0 0.0
        %2083 = vmatpush1.msra.mxu0 0.0
        %2084 = vmatprep.subr.mxu0 0.0
        %2085 = vmatpush1.msra.mxu0 0.0
        %2086 = vmatprep.subr.mxu0 0.0
        %2087 = vmatpush1.msra.mxu0 0.0
        %2088 = vmatprep.subr.mxu0 0.0
        %2089 = vmatpush1.msra.mxu0 0.0
        %2090 = vmatprep.subr.mxu0 0.0
        %2091 = vmatpush1.msra.mxu0 0.0
        %2092 = vmatprep.subr.mxu0 0.0
        %2093 = vmatpush1.msra.mxu0 0.0
        %2094 = vmatprep.subr.mxu0 0.0
        %2095 = vmatpush1.msra.mxu0 0.0
        %2096 = vmatprep.subr.mxu0 0.0
        %2097 = vmatpush1.msra.mxu0 0.0
        %2098 = vmatprep.subr.mxu0 0.0
        %2099 = vmatpush1.msra.mxu0 0.0
        %2100 = vmatprep.subr.mxu0 0.0
        %2101 = vmatpush1.msra.mxu0 0.0
        %2102 = vmatprep.subr.mxu0 0.0
        %2103 = vmatpush1.msra.mxu0 0.0
        %2104 = vmatprep.subr.mxu0 0.0
        %2105 = vmatpush1.msra.mxu0 0.0
        %2106 = vmatprep.subr.mxu0 0.0
        %2107 = vmatpush1.msra.mxu0 0.0
        %2108 = vmatprep.subr.mxu0 0.0
        %2109 = vmatpush1.msra.mxu0 0.0
        %2110 = vmatprep.subr.mxu0 0.0
        %2111 = vmatpush1.msra.mxu0 0.0
        %2112 = vmatprep.subr.mxu0 0.0
        %2113 = vmatpush1.msra.mxu0 0.0
        %2114 = vmatprep.subr.mxu0 0.0
        %2115 = vmatpush1.msra.mxu0 0.0
        %2116 = vmatprep.subr.mxu0 0.0
        %2117 = vmatpush1.msra.mxu0 0.0
        %2118 = vmatprep.subr.mxu0 0.0
        %2119 = vmatpush1.msra.mxu0 0.0
        %2120 = vmatprep.subr.mxu0 0.0
        %2121 = vmatpush1.msra.mxu0 0.0
        %2122 = vmatprep.subr.mxu0 0.0
        %2123 = vmatpush1.msra.mxu0 0.0
        %2124 = vmatprep.subr.mxu0 0.0
        %2125 = vmatpush1.msra.mxu0 0.0
        %2126 = vmatprep.subr.mxu0 0.0
        %2127 = vmatpush1.msra.mxu0 0.0
        %2128 = vmatprep.subr.mxu0 0.0
        %2129 = vmatpush1.msra.mxu0 0.0
        %2130 = vmatprep.subr.mxu0 0.0
        %2131 = vmatpush1.msra.mxu0 0.0
        %2132 = vmatprep.subr.mxu0 0.0
        %2133 = vmatpush1.msra.mxu0 0.0
        %2134 = vmatprep.mubr.f32.mxu0 0.0
        %2135 = vmatmul.mubr.f32.gmra.mrb[0].mxu0 %v1992
        %v2136 = vpop.f32.mrb[0].mxu0
        %v2137 = vadd.f32 0.0, %v2136
        %v2138 = vpop.f32.mrb[0].mxu0
        %2139 = vdwg.mxu0
        %v2140 = vmax.f32 %v2064, %v2137
        %v2142 = vcombine.high %v2140, %v2140
        %v2144 = vunpack.c.l.s4 1983009808
        %v2145 = vunpack.c.0.s8 %v2144
        %v2146 = vlaneseq
        %v2147 = vshrl.u32 %v2146, 7
        %v2148 = vsub.s32 %v2145, %v2147
        %v2149 = vrot.slane %v2140, %v2148
        %v2151 = vunpack.c.l.s4 1983009808
        %v2152 = vunpack.c.0.s8 %v2151
        %v2153 = vlaneseq
        %v2154 = vshrl.u32 %v2153, 7
        %v2155 = vsub.s32 %v2152, %v2154
        %v2156 = vrot.slane %v2142, %v2155
        %v2157 = vcombine.high %v2149, %v2149
        %v2158 = vcombine.high %v2156, %v2156
        %v2163 = vadd.f32 %v1869, %v2149
        %v2164 = vadd.f32 %v1870, %v2157
        %v2165 = vadd.f32 %v1871, %v2156
        %v2166 = vadd.f32 %v1872, %v2158
        %vm2167 = vcmask 9216
        %2168 = vst.msk [vmem:[%s402] sm:$0x3] %vm2167, %v2163
        %2169 = vst.msk [vmem:[%s402 + $0x2] sm:$0x3] %vm2167, %v2164
        %2170 = vst.msk [vmem:[%s402 + $0x4] sm:$0x3] %vm2167, %v2165
        %2171 = vst.msk [vmem:[%s402 + $0x6] sm:$0x3] %vm2167, %v2166
        %s2172 = sand.u32 %s140, 1
        %s2173 = scalar_lea.sflag [#allocation4], %s2172
        %s2174 = sand.u32 %s140, 1
        %s2175 = smul.addr %s2174, 64
        %s2176 = scalar_lea.vmem [#allocation5], %s2175
        %s2177 = sand.u32 %s166, 1
        %s2178 = scalar_lea.sflag [#allocation7], %s2177
        %s2179 = sand.u32 %s166, 1
        %s2180 = smul.addr %s2179, 32
        %s2181 = scalar_lea.vmem [#allocation6], %s2180
        %s2182 = smul.u32 4, %s28
        %p2183 = scmp.lt.s32.totalorder %s2182, 7
        %s2184 = scalar_select %p2183, %s2182, 7
        %s2185 = smul.addr %s2184, 4
        %s2186 = scalar_lea.vmem %s6, %s2185
        %s2187 = smul.u32 4, %s28
        %p2188 = scmp.lt.s32.totalorder %s2187, 7
        %s2189 = scalar_select %p2188, %s2187, 7
        %s2190 = smul.addr %s2189, 2
        %s2191 = scalar_lea.vmem %s7, %s2190
        // Predicated region
        $region41: #{tpu_custom_call.1} parent=35 // pred_check
          %p2192 = pneg %p150
        $region42: #{tpu_custom_call.1} parent=35 // pred_check_branch
          %2194 = sbr.rel (%p2192) target = $region44
        $region43: #{tpu_custom_call.1} parent=35 // pred_region
          %s2195 = smul.u32 4, %s28
          %s2197 = ssub.s32 1024, 1024
          %2198 = vsyncadd %s2173, %s2197
          %s2199 = smul.addr %s2195, 2
          %s2200 = smul.addr %s2199, 128
          %s2201 = scalar_lea.hbm %s4, %s2200
          %s2202 = sshll.u32 %s2176, 4
          %s2203 = int_to_ptr.vmem [resolvable:$true] %s2202
          %2208 = dma.vmem_to_hbm [thread:$0]  %s2203, 1024, %s2201, %s2173, 128, 128, 8
        $region44: #{tpu_custom_call.1} parent=35 // pred_fallthru
          _
        // Predicated region
        $region45: #{tpu_custom_call.1} parent=35 // pred_check
          %p2209 = pneg %p176
        $region46: #{tpu_custom_call.1} parent=35 // pred_check_branch
          %2211 = sbr.rel (%p2209) target = $region48
        $region47: #{tpu_custom_call.1} parent=35 // pred_region
          %s2212 = smul.u32 4, %s28
          %s2214 = ssub.s32 512, 512
          %2215 = vsyncadd %s2178, %s2214
          %s2216 = smul.addr %s2212, 128
          %s2217 = scalar_lea.hbm %s5, %s2216
          %s2218 = sshll.u32 %s2181, 4
          %s2219 = int_to_ptr.vmem [resolvable:$true] %s2218
          %2224 = dma.vmem_to_hbm [thread:$0]  %s2219, 512, %s2217, %s2178, 128, 128, 8
        $region48: #{tpu_custom_call.1} parent=35 // pred_fallthru
          _
        // Predicated region
        $region49: #{tpu_custom_call.1} parent=35 // pred_check
          %p2225 = pneg %p202
        $region50: #{tpu_custom_call.1} parent=35 // pred_check_branch
          %2227 = sbr.rel (%p2225) target = $region52
        $region51: #{tpu_custom_call.1} parent=35 // pred_region
          %s2228 = smul.u32 4, %s28
        $region52: #{tpu_custom_call.1} parent=35 // pred_fallthru
          _
        // Predicated region
        $region53: #{tpu_custom_call.1} parent=35 // pred_check
          %p2229 = pneg %p228
        $region54: #{tpu_custom_call.1} parent=35 // pred_check_branch
          %2231 = sbr.rel (%p2229) target = $region56
        $region55: #{tpu_custom_call.1} parent=35 // pred_region
          %s2232 = smul.u32 4, %s28
        $region56: #{tpu_custom_call.1} parent=35 // pred_fallthru
          _
      $region36: #{tpu_custom_call.1} parent=5 // pred_fallthru
        _
      %p2233 = scmp.le.s32.totalorder 2, %s23
      // Predicated region
      $region57: #{tpu_custom_call.1} parent=5 // pred_check
        %p2234 = pneg %p2233
      $region58: #{tpu_custom_call.1} parent=5 // pred_check_branch
        %2236 = sbr.rel (%p2234) target = $region60
      $region59: #{tpu_custom_call.1} parent=5 // pred_region
        %s2237 = ssub.s32 %s23, 2
        // Predicated region
        $region61: #{tpu_custom_call.1} parent=59 // pred_check
          %p2238 = pneg %p156
        $region62: #{tpu_custom_call.1} parent=59 // pred_check_branch
          %2240 = sbr.rel (%p2238) target = $region64
        $region63: #{tpu_custom_call.1} parent=59 // pred_region
          %s2241 = sand.u32 %s141, 1
          %s2242 = scalar_lea.sflag [#allocation4], %s2241
          %s2243 = sand.u32 %s141, 1
          %s2244 = smul.addr %s2243, 64
          %s2245 = scalar_lea.vmem [#allocation5], %s2244
          %2246 = dma.done %s2242, 1024
        $region64: #{tpu_custom_call.1} parent=59 // pred_fallthru
          _
        // Predicated region
        $region65: #{tpu_custom_call.1} parent=59 // pred_check
          %p2247 = pneg %p182
        $region66: #{tpu_custom_call.1} parent=59 // pred_check_branch
          %2249 = sbr.rel (%p2247) target = $region68
        $region67: #{tpu_custom_call.1} parent=59 // pred_region
          %s2250 = sand.u32 %s167, 1
          %s2251 = scalar_lea.sflag [#allocation7], %s2250
          %s2252 = sand.u32 %s167, 1
          %s2253 = smul.addr %s2252, 32
          %s2254 = scalar_lea.vmem [#allocation6], %s2253
          %2255 = dma.done %s2251, 512
        $region68: #{tpu_custom_call.1} parent=59 // pred_fallthru
          _
        // Predicated region
        $region69: #{tpu_custom_call.1} parent=59 // pred_check
          %p2256 = pneg %p208
        $region70: #{tpu_custom_call.1} parent=59 // pred_check_branch
          %2258 = sbr.rel (%p2256) target = $region72
        $region71: #{tpu_custom_call.1} parent=59 // pred_region
          %s2259 = smul.u32 4, %s29
          %p2260 = scmp.lt.s32.totalorder %s2259, 7
          %s2261 = scalar_select %p2260, %s2259, 7
          %s2262 = smul.addr %s2261, 4
          %s2263 = scalar_lea.vmem %s6, %s2262
        $region72: #{tpu_custom_call.1} parent=59 // pred_fallthru
          _
        // Predicated region
        $region73: #{tpu_custom_call.1} parent=59 // pred_check
          %p2264 = pneg %p234
        $region74: #{tpu_custom_call.1} parent=59 // pred_check_branch
          %2266 = sbr.rel (%p2264) target = $region76
        $region75: #{tpu_custom_call.1} parent=59 // pred_region
          %s2267 = smul.u32 4, %s29
          %p2268 = scmp.lt.s32.totalorder %s2267, 7
          %s2269 = scalar_select %p2268, %s2267, 7
          %s2270 = smul.addr %s2269, 2
          %s2271 = scalar_lea.vmem %s7, %s2270
        $region76: #{tpu_custom_call.1} parent=59 // pred_fallthru
          _
      $region60: #{tpu_custom_call.1} parent=5 // pred_fallthru
        _
    $region6: #{tpu_custom_call.1} parent=1 // loop_footer
      %s27 = sadd.s32 1, %s23
    $region7: #{tpu_custom_call.1} parent=1 // loop_footer_branch
      %22 = sbr.rel target = $region3
    $region8: #{tpu_custom_call.1} parent=1 // loop_exit
      _
    %2272 = vsyncpa [#allocation3], 1
    %s2273 = scalar_lea.sflag [#allocation3], 1
    %2274 = vsyncpa %s2273, 1
    %2275 = vsyncpa [#allocation4], 1
    %s2276 = scalar_lea.sflag [#allocation4], 1
    %2277 = vsyncpa %s2276, 1
    %2278 = vsyncpa [#allocation7], 1
    %s2279 = scalar_lea.sflag [#allocation7], 1
    %2280 = vsyncpa %s2279, 1

</llo_original>
